<compile_context>
chip_gen: v7x
topology: tpu7x:2x2x1
jax: 0.10.0
libtpu: 0.0.40
codegen_flags: <defaults>
</compile_context>

<pallas_src>
import functools

import jax
import jax.numpy as jnp
import numpy as np
from jax import lax
from jax.experimental import pallas as pl
from jax.experimental.pallas import tpu as pltpu


def conv_residual_net_kernel(x_ref, wi_ref, bi_ref,
                             s0_ref, h0_ref, w0_ref, b0_ref,
                             w1_ref, b1_ref,
                             wf_ref, bf_ref, o_ref,
                             *, L, K, num_blocks, c_in_p, h_p):
    rows = x_ref.shape[0]                      # seqs_per_tile * L (static)
    pad = K // 2

    # Position of each row inside its own sequence.  Rows are batch-major and
    # each grid tile holds WHOLE sequences, so the same (row % L) mask
    # implements 'same' zero padding AND stops cross-sequence leakage from the
    # cyclic roll.
    row_l = lax.broadcasted_iota(jnp.int32, (rows, 1), 0) % L

    # Pre-materialize full-width f32 tap masks once per needed width
    # (hoisted: JAX does not CSE broadcast_in_dim, so jnp.where inside every
    # conv would re-emit the broadcast each time).
    def make_masks(width):
        masks = {}
        for k in range(K):
            off = k - pad
            if off == 0:
                continue
            src = row_l + off
            m = ((src >= 0) & (src < L)).astype(jnp.float32)
            masks[k] = jnp.broadcast_to(m, (rows, width))
        return masks

    masks_h = make_masks(h_p)
    masks_in = masks_h if c_in_p == h_p else make_masks(c_in_p)

    def conv_same(t, masks, w, bias):
        # t: (rows, C) f32; w: (K*C, C_out) bf16; bias: (1, C_out) f32.
        # im2col fusion: one (rows, K*C) @ (K*C, C_out) MXU matmul per conv —
        # K-times deeper contraction, no per-tap VPU accumulate adds.
        pieces = []
        for k in range(K):                     # K static -> fully unrolled
            off = k - pad
            if off == 0:
                pieces.append(t)               # interior tap: no shift, no mask
            else:
                # Roll in f32 (single XLU vrot), mask, then the whole slab is
                # cast to bf16 once below.
                shifted = pltpu.roll(t, shift=(-off) % rows, axis=0)
                pieces.append(shifted * masks[k])
        slab = jnp.concatenate(pieces, axis=-1).astype(jnp.bfloat16)
        return jnp.dot(slab, w, preferred_element_type=jnp.float32) + bias

    # ---- initial Conv1d: C_in -> H ----
    t = conv_same(x_ref[...], masks_in, wi_ref[...], bi_ref[...])

    # ---- residual blocks (num_blocks small & static -> unrolled) ----
    # TODO(synk): for large num_blocks switch to lax.fori_loop with dynamic
    # first-axis ref indexing (w0_ref[blk], ...) to bound live ranges.
    for blk in range(num_blocks):
        r = t
        u = t * s0_ref[blk, :, :] + h0_ref[blk, :, :]     # BN#0 (eval, folded)
        u = jnp.maximum(u, 0.0)                           # ReLU
        # Conv1d #0 with BN#1 folded into its weight/bias (exact fold).
        u = conv_same(u, masks_h, w0_ref[blk, :, :], b0_ref[blk, :, :])
        u = jnp.maximum(u, 0.0)                           # ReLU
        # Dropout(p=0.1): identity in eval mode.
        u = conv_same(u, masks_h, w1_ref[blk, :, :], b1_ref[blk, :, :])
        t = r + u                                         # residual connection

    # ---- final Conv1d: H -> C_out (lane-dense padded output) ----
    o_ref[...] = conv_same(t, masks_h, wf_ref[...], bf_ref[...])


def _round_up(n, m):
    return ((n + m - 1) // m) * m


def conv_residual_net(x_ncl, params, kernel_size, eps=1e-3, seqs_per_tile=None):
    """x_ncl: (B, C_in, L) float32, matching torch Conv1d input layout."""
    B, C_in, L = x_ncl.shape
    K = kernel_size
    assert K % 2 == 1, "padding='same' fold below assumes an odd kernel_size"

    H = params["init_w"].shape[0]
    C_out = params["final_w"].shape[0]
    num_blocks = len(params["blocks"])
    BL = B * L

    LANE = 128
    C_in_p = _round_up(C_in, LANE)
    H_p = _round_up(H, LANE)
    C_out_p = _round_up(C_out, LANE)

    # Row tiling: whole sequences per tile (keeps the roll+mask 'same' padding
    # exact with no halo).  Rows per tile must be a multiple of 8 (f32 sublane
    # tiling); fall back to the whole batch in one tile if no divisor works.
    if seqs_per_tile is None:
        target_rows = 512
        seqs_per_tile = B
        for n in range(1, B + 1):
            if B % n or (n * L) % 8 or n * L > max(target_rows, L):
                continue
            seqs_per_tile = n
    assert B % seqs_per_tile == 0 and (seqs_per_tile * L) % 8 == 0
    rows_tile = seqs_per_tile * L
    num_tiles = B // seqs_per_tile

    # NCL -> NLC, zero-pad channels to lane width, flatten to (B*L, C_in_p).
    x2d = jnp.transpose(x_ncl, (0, 2, 1)).astype(jnp.float32)
    x2d = jnp.pad(x2d, ((0, 0), (0, 0), (0, C_in_p - C_in))).reshape(BL, C_in_p)

    def pad_vec(v, n_p, fill=0.0):
        return jnp.pad(v.astype(jnp.float32), (0, n_p - v.shape[0]),
                       constant_values=fill)

    def im2col_w(w, c_in_p, c_out_p):
        # torch Conv1d weight (C_out, C_in, K) -> (K, C_in_p, C_out_p) f32,
        # zero-padded to lane-dense widths.
        c_out, c_in, _ = w.shape
        wt = jnp.transpose(w, (2, 1, 0)).astype(jnp.float32)
        return jnp.pad(wt, ((0, 0), (0, c_in_p - c_in), (0, c_out_p - c_out)))

    def fold_bn(g, b, m, v, n_p):
        # Padded channels: gamma=0, var=1 -> scale=0, shift=0 (stay zero).
        g = pad_vec(g, n_p)
        b = pad_vec(b, n_p)
        m = pad_vec(m, n_p)
        v = pad_vec(v, n_p, fill=1.0)
        s = g / jnp.sqrt(v + eps)
        return s, b - m * s

    # Weights go bf16 (MXU operands); biases / BN scale-shift stay f32.
    wi = (im2col_w(params["init_w"], C_in_p, H_p)
          .reshape(K * C_in_p, H_p).astype(jnp.bfloat16))
    bi = pad_vec(params["init_b"], H_p).reshape(1, H_p)
    wf = (im2col_w(params["final_w"], H_p, C_out_p)
          .reshape(K * H_p, C_out_p).astype(jnp.bfloat16))
    bf = pad_vec(params["final_b"], C_out_p).reshape(1, C_out_p)

    s0_l, h0_l, w0_l, b0_l, w1_l, b1_l = [], [], [], [], [], []
    for blk in params["blocks"]:
        s0, h0 = fold_bn(blk["bn0_gamma"], blk["bn0_beta"],
                         blk["bn0_mean"], blk["bn0_var"], H_p)
        s2, h2 = fold_bn(blk["bn1_gamma"], blk["bn1_beta"],
                         blk["bn1_mean"], blk["bn1_var"], H_p)
        # Fold BN#1 into conv0 (exact: no nonlinearity between them).
        w0 = im2col_w(blk["conv0_w"], H_p, H_p) * s2[None, None, :]
        b0 = pad_vec(blk["conv0_b"], H_p) * s2 + h2
        s0_l.append(s0.reshape(1, H_p))
        h0_l.append(h0.reshape(1, H_p))
        w0_l.append(w0.reshape(K * H_p, H_p).astype(jnp.bfloat16))
        b0_l.append(b0.reshape(1, H_p))
        w1_l.append(im2col_w(blk["conv1_w"], H_p, H_p)
                    .reshape(K * H_p, H_p).astype(jnp.bfloat16))
        b1_l.append(pad_vec(blk["conv1_b"], H_p).reshape(1, H_p))

    s0 = jnp.stack(s0_l)                       # (nb, 1, H_p) f32
    h0 = jnp.stack(h0_l)                       # (nb, 1, H_p) f32
    w0 = jnp.stack(w0_l)                       # (nb, K*H_p, H_p) bf16
    b0 = jnp.stack(b0_l)                       # (nb, 1, H_p) f32
    w1 = jnp.stack(w1_l)                       # (nb, K*H_p, H_p) bf16
    b1 = jnp.stack(b1_l)                       # (nb, 1, H_p) f32

    kernel = functools.partial(conv_residual_net_kernel, L=L, K=K,
                               num_blocks=num_blocks, c_in_p=C_in_p, h_p=H_p)

    out2d = pl.pallas_call(
        kernel,
        out_shape=jax.ShapeDtypeStruct((BL, C_out_p), jnp.float32),
        grid_spec=pltpu.PrefetchScalarGridSpec(
            num_scalar_prefetch=0,
            grid=(num_tiles,),                 # whole sequences per tile
            in_specs=[
                pl.BlockSpec((rows_tile, C_in_p), lambda i: (i, 0)),        # x tile
                # Weight/bias blocks are constant over the row axis -> stay
                # resident in VMEM, no re-DMA per grid step.
                pl.BlockSpec((K * C_in_p, H_p), lambda i: (0, 0)),          # init w
                pl.BlockSpec((1, H_p), lambda i: (0, 0)),                   # init b
                pl.BlockSpec((num_blocks, 1, H_p), lambda i: (0, 0, 0)),    # BN0 scale
                pl.BlockSpec((num_blocks, 1, H_p), lambda i: (0, 0, 0)),    # BN0 shift
                pl.BlockSpec((num_blocks, K * H_p, H_p), lambda i: (0, 0, 0)),  # conv0 w
                pl.BlockSpec((num_blocks, 1, H_p), lambda i: (0, 0, 0)),    # conv0 b
                pl.BlockSpec((num_blocks, K * H_p, H_p), lambda i: (0, 0, 0)),  # conv1 w
                pl.BlockSpec((num_blocks, 1, H_p), lambda i: (0, 0, 0)),    # conv1 b
                pl.BlockSpec((K * H_p, C_out_p), lambda i: (0, 0)),         # final w
                pl.BlockSpec((1, C_out_p), lambda i: (0, 0)),               # final b
            ],
            out_specs=pl.BlockSpec((rows_tile, C_out_p), lambda i: (i, 0)),
        ),
        compiler_params=pltpu.CompilerParams(
            dimension_semantics=("parallel",),
            vmem_limit_bytes=64 * 1024 * 1024),
    )(x2d, wi, bi, s0, h0, w0, b0, w1, b1, wf, bf)

    # Strip channel padding: (B*L, C_out_p) -> (B, L, C_out) -> torch NCL.
    out = out2d[:, :C_out].reshape(B, L, C_out)
    return jnp.transpose(out, (0, 2, 1))


def reference_forward(x_ncl, params, kernel_size, eps=1e-3):
    """Pure-JAX f32 reference mirroring the PyTorch ConvResidualNet in eval mode."""
    def bn(x, g, b, m, v):
        return ((x - m[None, :, None]) / jnp.sqrt(v[None, :, None] + eps)
                * g[None, :, None] + b[None, :, None])

    def conv(x, w, b):
        y = lax.conv_general_dilated(x, w, window_strides=(1,), padding="SAME",
                                     dimension_numbers=("NCH", "OIH", "NCH"))
        return y + b[None, :, None]

    t = conv(x_ncl, params["init_w"], params["init_b"])
    for blk in params["blocks"]:
        r = t
        u = bn(r, blk["bn0_gamma"], blk["bn0_beta"], blk["bn0_mean"], blk["bn0_var"])
        u = jax.nn.relu(u)
        u = conv(u, blk["conv0_w"], blk["conv0_b"])
        u = bn(u, blk["bn1_gamma"], blk["bn1_beta"], blk["bn1_mean"], blk["bn1_var"])
        u = jax.nn.relu(u)
        # dropout: identity in eval mode
        u = conv(u, blk["conv1_w"], blk["conv1_b"])
        t = r + u
    return conv(t, params["final_w"], params["final_b"])


if __name__ == "__main__":
    B, C_IN, C_OUT, H, L, K, NUM_BLOCKS = 2, 4, 4, 32, 16, 3, 2

    keys = iter(jax.random.split(jax.random.PRNGKey(0), 64))

    def nk():
        return next(keys)

    def conv_init(c_out, c_in, k, bound):
        w = jax.random.uniform(nk(), (c_out, c_in, k), jnp.float32, -bound, bound)
        b = jax.random.uniform(nk(), (c_out,), jnp.float32, -bound, bound)
        return w, b

    init_w, init_b = conv_init(H, C_IN, K, 1.0 / np.sqrt(C_IN * K))

    blocks = []
    for _ in range(NUM_BLOCKS):
        c0w, c0b = conv_init(H, H, K, 1.0 / np.sqrt(H * K))   # torch default init
        c1w, c1b = conv_init(H, H, K, 1e-3)                   # zero_initialization=True
        blocks.append({
            # eval-mode BN stats (non-trivial values to exercise the folds)
            "bn0_gamma": jax.random.uniform(nk(), (H,), jnp.float32, 0.5, 1.5),
            "bn0_beta": 0.1 * jax.random.normal(nk(), (H,), jnp.float32),
            "bn0_mean": 0.5 * jax.random.normal(nk(), (H,), jnp.float32),
            "bn0_var": jax.random.uniform(nk(), (H,), jnp.float32, 0.5, 1.5),
            "bn1_gamma": jax.random.uniform(nk(), (H,), jnp.float32, 0.5, 1.5),
            "bn1_beta": 0.1 * jax.random.normal(nk(), (H,), jnp.float32),
            "bn1_mean": 0.5 * jax.random.normal(nk(), (H,), jnp.float32),
            "bn1_var": jax.random.uniform(nk(), (H,), jnp.float32, 0.5, 1.5),
            "conv0_w": c0w, "conv0_b": c0b,
            "conv1_w": c1w, "conv1_b": c1b,
        })

    final_w, final_b = conv_init(C_OUT, H, K, 1.0 / np.sqrt(H * K))

    params = {"init_w": init_w, "init_b": init_b, "blocks": blocks,
              "final_w": final_w, "final_b": final_b}

    x = jax.random.normal(nk(), (B, C_IN, L), jnp.float32)

    # seqs_per_tile=1 -> grid=(2,): exercises the parallel row-tiling path.
    out = jax.block_until_ready(conv_residual_net(x, params, K, seqs_per_tile=1))
    ref = jax.block_until_ready(reference_forward(x, params, K))
    # bf16 matmul operands (f32 accumulate) -> loosened tolerance vs f32 ref.
    np.testing.assert_allclose(np.asarray(out), np.asarray(ref),
                               rtol=3e-2, atol=3e-2)
    print("KERNEL_OK")
</pallas_src>

<mosaic_0001>
module attributes {stable_mosaic.version = 11 : i64} {
  func.func @conv_residual_net_kernel(%arg0: i32, %arg1: memref<16x128xf32, #tpu.memory_space<vmem>>, %arg2: memref<384x128xbf16, #tpu.memory_space<vmem>>, %arg3: memref<1x128xf32, #tpu.memory_space<vmem>>, %arg4: memref<2x1x128xf32, #tpu.memory_space<vmem>>, %arg5: memref<2x1x128xf32, #tpu.memory_space<vmem>>, %arg6: memref<2x384x128xbf16, #tpu.memory_space<vmem>>, %arg7: memref<2x1x128xf32, #tpu.memory_space<vmem>>, %arg8: memref<2x384x128xbf16, #tpu.memory_space<vmem>>, %arg9: memref<2x1x128xf32, #tpu.memory_space<vmem>>, %arg10: memref<384x128xbf16, #tpu.memory_space<vmem>>, %arg11: memref<1x128xf32, #tpu.memory_space<vmem>>, %arg12: memref<16x128xf32, #tpu.memory_space<vmem>>) attributes {dimension_semantics = [#tpu.dimension_semantics<parallel>], iteration_bounds = array<i64: 2>, scalar_prefetch = 0 : i64, scratch_operands = 0 : i64, tpu.core_type = #tpu.core_type<tc>, window_params = [{transform_indices = @transform_0, window_bounds = array<i64: 16, 128>}, {pipeline_mode = #tpu.pipeline_mode<synchronous>, transform_indices = @transform_1, window_bounds = array<i64: 384, 128>}, {pipeline_mode = #tpu.pipeline_mode<synchronous>, transform_indices = @transform_2, window_bounds = array<i64: 1, 128>}, {pipeline_mode = #tpu.pipeline_mode<synchronous>, transform_indices = @transform_3, window_bounds = array<i64: 2, 1, 128>}, {pipeline_mode = #tpu.pipeline_mode<synchronous>, transform_indices = @transform_4, window_bounds = array<i64: 2, 1, 128>}, {pipeline_mode = #tpu.pipeline_mode<synchronous>, transform_indices = @transform_5, window_bounds = array<i64: 2, 384, 128>}, {pipeline_mode = #tpu.pipeline_mode<synchronous>, transform_indices = @transform_6, window_bounds = array<i64: 2, 1, 128>}, {pipeline_mode = #tpu.pipeline_mode<synchronous>, transform_indices = @transform_7, window_bounds = array<i64: 2, 384, 128>}, {pipeline_mode = #tpu.pipeline_mode<synchronous>, transform_indices = @transform_8, window_bounds = array<i64: 2, 1, 128>}, {pipeline_mode = #tpu.pipeline_mode<synchronous>, transform_indices = @transform_9, window_bounds = array<i64: 384, 128>}, {pipeline_mode = #tpu.pipeline_mode<synchronous>, transform_indices = @transform_10, window_bounds = array<i64: 1, 128>}, {transform_indices = @transform_11, window_bounds = array<i64: 16, 128>}]} {
    %0 = tpu.iota {dimensions = array<i32: 0>} : vector<16x1xi32>
    %c16_i32 = arith.constant 16 : i32
    %c0_i32 = arith.constant 0 : i32
    %1 = arith.cmpi eq, %c16_i32, %c0_i32 : i32
    %c1_i32 = arith.constant 1 : i32
    %2 = arith.select %1, %c1_i32, %c16_i32 : i32
    %3 = vector.broadcast %2 : i32 to vector<16x1xi32>
    %4 = arith.remsi %0, %3 : vector<16x1xi32>
    %c0_i32_0 = arith.constant 0 : i32
    %5 = vector.broadcast %c0_i32_0 : i32 to vector<16x1xi32>
    %6 = arith.cmpi ne, %4, %5 : vector<16x1xi32>
    %c0_i32_1 = arith.constant 0 : i32
    %7 = vector.broadcast %c0_i32_1 : i32 to vector<16x1xi32>
    %8 = arith.cmpi slt, %4, %7 : vector<16x1xi32>
    %c0_i32_2 = arith.constant 0 : i32
    %9 = arith.cmpi slt, %2, %c0_i32_2 : i32
    %10 = vector.broadcast %9 : i1 to vector<16x1xi1>
    %11 = vector.broadcast %10 : vector<16x1xi1> to vector<16x1xi1>
    %12 = arith.xori %8, %11 : vector<16x1xi1>
    %13 = arith.andi %12, %6 : vector<16x1xi1>
    %14 = vector.broadcast %2 : i32 to vector<16x1xi32>
    %15 = arith.addi %4, %14 : vector<16x1xi32>
    %16 = arith.select %13, %15, %4 : vector<16x1xi1>, vector<16x1xi32>
    %c-1_i32 = arith.constant -1 : i32
    %17 = vector.broadcast %c-1_i32 : i32 to vector<16x1xi32>
    %18 = arith.addi %16, %17 : vector<16x1xi32>
    %c0_i32_3 = arith.constant 0 : i32
    %19 = vector.broadcast %c0_i32_3 : i32 to vector<16x1xi32>
    %20 = arith.cmpi sge, %18, %19 : vector<16x1xi32>
    %c16_i32_4 = arith.constant 16 : i32
    %21 = vector.broadcast %c16_i32_4 : i32 to vector<16x1xi32>
    %22 = arith.cmpi slt, %18, %21 : vector<16x1xi32>
    %23 = arith.andi %20, %22 : vector<16x1xi1>
    %24 = arith.extui %23 : vector<16x1xi1> to vector<16x1xi32>
    %25 = arith.sitofp %24 : vector<16x1xi32> to vector<16x1xf32>
    %26 = vector.shape_cast %25 : vector<16x1xf32> to vector<16x1xf32>
    %27 = vector.broadcast %26 : vector<16x1xf32> to vector<16x128xf32>
    %c1_i32_5 = arith.constant 1 : i32
    %28 = vector.broadcast %c1_i32_5 : i32 to vector<16x1xi32>
    %29 = arith.addi %16, %28 : vector<16x1xi32>
    %c0_i32_6 = arith.constant 0 : i32
    %30 = vector.broadcast %c0_i32_6 : i32 to vector<16x1xi32>
    %31 = arith.cmpi sge, %29, %30 : vector<16x1xi32>
    %c16_i32_7 = arith.constant 16 : i32
    %32 = vector.broadcast %c16_i32_7 : i32 to vector<16x1xi32>
    %33 = arith.cmpi slt, %29, %32 : vector<16x1xi32>
    %34 = arith.andi %31, %33 : vector<16x1xi1>
    %35 = arith.extui %34 : vector<16x1xi1> to vector<16x1xi32>
    %36 = arith.sitofp %35 : vector<16x1xi32> to vector<16x1xf32>
    %37 = vector.shape_cast %36 : vector<16x1xf32> to vector<16x1xf32>
    %38 = vector.broadcast %37 : vector<16x1xf32> to vector<16x128xf32>
    %c0 = arith.constant 0 : index
    %c0_8 = arith.constant 0 : index
    %39 = vector.load %arg1[%c0, %c0_8] : memref<16x128xf32, #tpu.memory_space<vmem>>, vector<16x128xf32>
    %c0_9 = arith.constant 0 : index
    %c0_10 = arith.constant 0 : index
    %40 = vector.load %arg2[%c0_9, %c0_10] : memref<384x128xbf16, #tpu.memory_space<vmem>>, vector<384x128xbf16>
    %c0_11 = arith.constant 0 : index
    %c0_12 = arith.constant 0 : index
    %41 = vector.load %arg3[%c0_11, %c0_12] : memref<1x128xf32, #tpu.memory_space<vmem>>, vector<1x128xf32>
    %c1_i32_13 = arith.constant 1 : i32
    %42 = tpu.dynamic_rotate %39 by %c1_i32_13 dim 0 : vector<16x128xf32>, i32 -> vector<16x128xf32>
    %43 = arith.mulf %42, %27 : vector<16x128xf32>
    %c15_i32 = arith.constant 15 : i32
    %44 = tpu.dynamic_rotate %39 by %c15_i32 dim 0 : vector<16x128xf32>, i32 -> vector<16x128xf32>
    %45 = arith.mulf %44, %38 : vector<16x128xf32>
    %46 = tpu.concatenate %43, %39, %45 in 1 : vector<16x128xf32>, vector<16x128xf32>, vector<16x128xf32> -> vector<16x384xf32>
    %47 = arith.truncf %46 : vector<16x384xf32> to vector<16x384xbf16>
    %cst = arith.constant dense<0.000000e+00> : vector<16x128xf32>
    %48 = tpu.matmul %47, %40, %cst {dimension_numbers = #tpu.dot_dimension_numbers<[1], [0], [0], [1], [0, 0, 1, 1], [], []>} : vector<16x384xbf16>, vector<384x128xbf16>, vector<16x128xf32> -> vector<16x128xf32>
    %49 = vector.broadcast %41 : vector<1x128xf32> to vector<16x128xf32>
    %50 = arith.addf %48, %49 : vector<16x128xf32>
    %c0_14 = arith.constant 0 : index
    %c0_15 = arith.constant 0 : index
    %c0_16 = arith.constant 0 : index
    %51 = vector.load %arg4[%c0_14, %c0_15, %c0_16] : memref<2x1x128xf32, #tpu.memory_space<vmem>>, vector<1x1x128xf32>
    %52 = vector.shape_cast %51 : vector<1x1x128xf32> to vector<1x128xf32>
    %53 = vector.broadcast %52 : vector<1x128xf32> to vector<16x128xf32>
    %54 = arith.mulf %50, %53 : vector<16x128xf32>
    %c0_17 = arith.constant 0 : index
    %c0_18 = arith.constant 0 : index
    %c0_19 = arith.constant 0 : index
    %55 = vector.load %arg5[%c0_17, %c0_18, %c0_19] : memref<2x1x128xf32, #tpu.memory_space<vmem>>, vector<1x1x128xf32>
    %56 = vector.shape_cast %55 : vector<1x1x128xf32> to vector<1x128xf32>
    %57 = vector.broadcast %56 : vector<1x128xf32> to vector<16x128xf32>
    %58 = arith.addf %54, %57 : vector<16x128xf32>
    %cst_20 = arith.constant 0.000000e+00 : f32
    %59 = vector.broadcast %cst_20 : f32 to vector<16x128xf32>
    %60 = arith.maximumf %58, %59 : vector<16x128xf32>
    %c0_21 = arith.constant 0 : index
    %c0_22 = arith.constant 0 : index
    %c0_23 = arith.constant 0 : index
    %61 = vector.load %arg6[%c0_21, %c0_22, %c0_23] : memref<2x384x128xbf16, #tpu.memory_space<vmem>>, vector<1x384x128xbf16>
    %62 = vector.shape_cast %61 : vector<1x384x128xbf16> to vector<384x128xbf16>
    %c0_24 = arith.constant 0 : index
    %c0_25 = arith.constant 0 : index
    %c0_26 = arith.constant 0 : index
    %63 = vector.load %arg7[%c0_24, %c0_25, %c0_26] : memref<2x1x128xf32, #tpu.memory_space<vmem>>, vector<1x1x128xf32>
    %64 = vector.shape_cast %63 : vector<1x1x128xf32> to vector<1x128xf32>
    %c1_i32_27 = arith.constant 1 : i32
    %65 = tpu.dynamic_rotate %60 by %c1_i32_27 dim 0 : vector<16x128xf32>, i32 -> vector<16x128xf32>
    %66 = arith.mulf %65, %27 : vector<16x128xf32>
    %c15_i32_28 = arith.constant 15 : i32
    %67 = tpu.dynamic_rotate %60 by %c15_i32_28 dim 0 : vector<16x128xf32>, i32 -> vector<16x128xf32>
    %68 = arith.mulf %67, %38 : vector<16x128xf32>
    %69 = tpu.concatenate %66, %60, %68 in 1 : vector<16x128xf32>, vector<16x128xf32>, vector<16x128xf32> -> vector<16x384xf32>
    %70 = arith.truncf %69 : vector<16x384xf32> to vector<16x384xbf16>
    %cst_29 = arith.constant dense<0.000000e+00> : vector<16x128xf32>
    %71 = tpu.matmul %70, %62, %cst_29 {dimension_numbers = #tpu.dot_dimension_numbers<[1], [0], [0], [1], [0, 0, 1, 1], [], []>} : vector<16x384xbf16>, vector<384x128xbf16>, vector<16x128xf32> -> vector<16x128xf32>
    %72 = vector.broadcast %64 : vector<1x128xf32> to vector<16x128xf32>
    %73 = arith.addf %71, %72 : vector<16x128xf32>
    %cst_30 = arith.constant 0.000000e+00 : f32
    %74 = vector.broadcast %cst_30 : f32 to vector<16x128xf32>
    %75 = arith.maximumf %73, %74 : vector<16x128xf32>
    %c0_31 = arith.constant 0 : index
    %c0_32 = arith.constant 0 : index
    %c0_33 = arith.constant 0 : index
    %76 = vector.load %arg8[%c0_31, %c0_32, %c0_33] : memref<2x384x128xbf16, #tpu.memory_space<vmem>>, vector<1x384x128xbf16>
    %77 = vector.shape_cast %76 : vector<1x384x128xbf16> to vector<384x128xbf16>
    %c0_34 = arith.constant 0 : index
    %c0_35 = arith.constant 0 : index
    %c0_36 = arith.constant 0 : index
    %78 = vector.load %arg9[%c0_34, %c0_35, %c0_36] : memref<2x1x128xf32, #tpu.memory_space<vmem>>, vector<1x1x128xf32>
    %79 = vector.shape_cast %78 : vector<1x1x128xf32> to vector<1x128xf32>
    %c1_i32_37 = arith.constant 1 : i32
    %80 = tpu.dynamic_rotate %75 by %c1_i32_37 dim 0 : vector<16x128xf32>, i32 -> vector<16x128xf32>
    %81 = arith.mulf %80, %27 : vector<16x128xf32>
    %c15_i32_38 = arith.constant 15 : i32
    %82 = tpu.dynamic_rotate %75 by %c15_i32_38 dim 0 : vector<16x128xf32>, i32 -> vector<16x128xf32>
    %83 = arith.mulf %82, %38 : vector<16x128xf32>
    %84 = tpu.concatenate %81, %75, %83 in 1 : vector<16x128xf32>, vector<16x128xf32>, vector<16x128xf32> -> vector<16x384xf32>
    %85 = arith.truncf %84 : vector<16x384xf32> to vector<16x384xbf16>
    %cst_39 = arith.constant dense<0.000000e+00> : vector<16x128xf32>
    %86 = tpu.matmul %85, %77, %cst_39 {dimension_numbers = #tpu.dot_dimension_numbers<[1], [0], [0], [1], [0, 0, 1, 1], [], []>} : vector<16x384xbf16>, vector<384x128xbf16>, vector<16x128xf32> -> vector<16x128xf32>
    %87 = vector.broadcast %79 : vector<1x128xf32> to vector<16x128xf32>
    %88 = arith.addf %86, %87 : vector<16x128xf32>
    %89 = arith.addf %50, %88 : vector<16x128xf32>
    %c1 = arith.constant 1 : index
    %c0_40 = arith.constant 0 : index
    %c0_41 = arith.constant 0 : index
    %90 = vector.load %arg4[%c1, %c0_40, %c0_41] : memref<2x1x128xf32, #tpu.memory_space<vmem>>, vector<1x1x128xf32>
    %91 = vector.shape_cast %90 : vector<1x1x128xf32> to vector<1x128xf32>
    %92 = vector.broadcast %91 : vector<1x128xf32> to vector<16x128xf32>
    %93 = arith.mulf %89, %92 : vector<16x128xf32>
    %c1_42 = arith.constant 1 : index
    %c0_43 = arith.constant 0 : index
    %c0_44 = arith.constant 0 : index
    %94 = vector.load %arg5[%c1_42, %c0_43, %c0_44] : memref<2x1x128xf32, #tpu.memory_space<vmem>>, vector<1x1x128xf32>
    %95 = vector.shape_cast %94 : vector<1x1x128xf32> to vector<1x128xf32>
    %96 = vector.broadcast %95 : vector<1x128xf32> to vector<16x128xf32>
    %97 = arith.addf %93, %96 : vector<16x128xf32>
    %cst_45 = arith.constant 0.000000e+00 : f32
    %98 = vector.broadcast %cst_45 : f32 to vector<16x128xf32>
    %99 = arith.maximumf %97, %98 : vector<16x128xf32>
    %c1_46 = arith.constant 1 : index
    %c0_47 = arith.constant 0 : index
    %c0_48 = arith.constant 0 : index
    %100 = vector.load %arg6[%c1_46, %c0_47, %c0_48] : memref<2x384x128xbf16, #tpu.memory_space<vmem>>, vector<1x384x128xbf16>
    %101 = vector.shape_cast %100 : vector<1x384x128xbf16> to vector<384x128xbf16>
    %c1_49 = arith.constant 1 : index
    %c0_50 = arith.constant 0 : index
    %c0_51 = arith.constant 0 : index
    %102 = vector.load %arg7[%c1_49, %c0_50, %c0_51] : memref<2x1x128xf32, #tpu.memory_space<vmem>>, vector<1x1x128xf32>
    %103 = vector.shape_cast %102 : vector<1x1x128xf32> to vector<1x128xf32>
    %c1_i32_52 = arith.constant 1 : i32
    %104 = tpu.dynamic_rotate %99 by %c1_i32_52 dim 0 : vector<16x128xf32>, i32 -> vector<16x128xf32>
    %105 = arith.mulf %104, %27 : vector<16x128xf32>
    %c15_i32_53 = arith.constant 15 : i32
    %106 = tpu.dynamic_rotate %99 by %c15_i32_53 dim 0 : vector<16x128xf32>, i32 -> vector<16x128xf32>
    %107 = arith.mulf %106, %38 : vector<16x128xf32>
    %108 = tpu.concatenate %105, %99, %107 in 1 : vector<16x128xf32>, vector<16x128xf32>, vector<16x128xf32> -> vector<16x384xf32>
    %109 = arith.truncf %108 : vector<16x384xf32> to vector<16x384xbf16>
    %cst_54 = arith.constant dense<0.000000e+00> : vector<16x128xf32>
    %110 = tpu.matmul %109, %101, %cst_54 {dimension_numbers = #tpu.dot_dimension_numbers<[1], [0], [0], [1], [0, 0, 1, 1], [], []>} : vector<16x384xbf16>, vector<384x128xbf16>, vector<16x128xf32> -> vector<16x128xf32>
    %111 = vector.broadcast %103 : vector<1x128xf32> to vector<16x128xf32>
    %112 = arith.addf %110, %111 : vector<16x128xf32>
    %cst_55 = arith.constant 0.000000e+00 : f32
    %113 = vector.broadcast %cst_55 : f32 to vector<16x128xf32>
    %114 = arith.maximumf %112, %113 : vector<16x128xf32>
    %c1_56 = arith.constant 1 : index
    %c0_57 = arith.constant 0 : index
    %c0_58 = arith.constant 0 : index
    %115 = vector.load %arg8[%c1_56, %c0_57, %c0_58] : memref<2x384x128xbf16, #tpu.memory_space<vmem>>, vector<1x384x128xbf16>
    %116 = vector.shape_cast %115 : vector<1x384x128xbf16> to vector<384x128xbf16>
    %c1_59 = arith.constant 1 : index
    %c0_60 = arith.constant 0 : index
    %c0_61 = arith.constant 0 : index
    %117 = vector.load %arg9[%c1_59, %c0_60, %c0_61] : memref<2x1x128xf32, #tpu.memory_space<vmem>>, vector<1x1x128xf32>
    %118 = vector.shape_cast %117 : vector<1x1x128xf32> to vector<1x128xf32>
    %c1_i32_62 = arith.constant 1 : i32
    %119 = tpu.dynamic_rotate %114 by %c1_i32_62 dim 0 : vector<16x128xf32>, i32 -> vector<16x128xf32>
    %120 = arith.mulf %119, %27 : vector<16x128xf32>
    %c15_i32_63 = arith.constant 15 : i32
    %121 = tpu.dynamic_rotate %114 by %c15_i32_63 dim 0 : vector<16x128xf32>, i32 -> vector<16x128xf32>
    %122 = arith.mulf %121, %38 : vector<16x128xf32>
    %123 = tpu.concatenate %120, %114, %122 in 1 : vector<16x128xf32>, vector<16x128xf32>, vector<16x128xf32> -> vector<16x384xf32>
    %124 = arith.truncf %123 : vector<16x384xf32> to vector<16x384xbf16>
    %cst_64 = arith.constant dense<0.000000e+00> : vector<16x128xf32>
    %125 = tpu.matmul %124, %116, %cst_64 {dimension_numbers = #tpu.dot_dimension_numbers<[1], [0], [0], [1], [0, 0, 1, 1], [], []>} : vector<16x384xbf16>, vector<384x128xbf16>, vector<16x128xf32> -> vector<16x128xf32>
    %126 = vector.broadcast %118 : vector<1x128xf32> to vector<16x128xf32>
    %127 = arith.addf %125, %126 : vector<16x128xf32>
    %128 = arith.addf %89, %127 : vector<16x128xf32>
    %c0_65 = arith.constant 0 : index
    %c0_66 = arith.constant 0 : index
    %129 = vector.load %arg10[%c0_65, %c0_66] : memref<384x128xbf16, #tpu.memory_space<vmem>>, vector<384x128xbf16>
    %c0_67 = arith.constant 0 : index
    %c0_68 = arith.constant 0 : index
    %130 = vector.load %arg11[%c0_67, %c0_68] : memref<1x128xf32, #tpu.memory_space<vmem>>, vector<1x128xf32>
    %c1_i32_69 = arith.constant 1 : i32
    %131 = tpu.dynamic_rotate %128 by %c1_i32_69 dim 0 : vector<16x128xf32>, i32 -> vector<16x128xf32>
    %132 = arith.mulf %131, %27 : vector<16x128xf32>
    %c15_i32_70 = arith.constant 15 : i32
    %133 = tpu.dynamic_rotate %128 by %c15_i32_70 dim 0 : vector<16x128xf32>, i32 -> vector<16x128xf32>
    %134 = arith.mulf %133, %38 : vector<16x128xf32>
    %135 = tpu.concatenate %132, %128, %134 in 1 : vector<16x128xf32>, vector<16x128xf32>, vector<16x128xf32> -> vector<16x384xf32>
    %136 = arith.truncf %135 : vector<16x384xf32> to vector<16x384xbf16>
    %cst_71 = arith.constant dense<0.000000e+00> : vector<16x128xf32>
    %137 = tpu.matmul %136, %129, %cst_71 {dimension_numbers = #tpu.dot_dimension_numbers<[1], [0], [0], [1], [0, 0, 1, 1], [], []>} : vector<16x384xbf16>, vector<384x128xbf16>, vector<16x128xf32> -> vector<16x128xf32>
    %138 = vector.broadcast %130 : vector<1x128xf32> to vector<16x128xf32>
    %139 = arith.addf %137, %138 : vector<16x128xf32>
    %c0_72 = arith.constant 0 : index
    %c0_73 = arith.constant 0 : index
    %140 = vector.load %arg12[%c0_72, %c0_73] : memref<16x128xf32, #tpu.memory_space<vmem>>, vector<16x128xf32>
    tpu.vector_store %arg12[%c0_72, %c0_73], %139 {strides = array<i32>} : memref<16x128xf32, #tpu.memory_space<vmem>>, vector<16x128xf32>,
    return
  }
  func.func @transform_0(%arg0: i32) -> (i32, i32) {
    %c0_i32 = arith.constant 0 : i32
    %c0_i32_0 = arith.constant 0 : i32
    return %arg0, %c0_i32 : i32, i32
  }
  func.func @transform_1(%arg0: i32) -> (i32, i32) {
    %c0_i32 = arith.constant 0 : i32
    %c0_i32_0 = arith.constant 0 : i32
    %c0_i32_1 = arith.constant 0 : i32
    return %c0_i32, %c0_i32_0 : i32, i32
  }
  func.func @transform_2(%arg0: i32) -> (i32, i32) {
    %c0_i32 = arith.constant 0 : i32
    %c0_i32_0 = arith.constant 0 : i32
    %c0_i32_1 = arith.constant 0 : i32
    return %c0_i32, %c0_i32_0 : i32, i32
  }
  func.func @transform_3(%arg0: i32) -> (i32, i32, i32) {
    %c0_i32 = arith.constant 0 : i32
    %c0_i32_0 = arith.constant 0 : i32
    %c0_i32_1 = arith.constant 0 : i32
    %c0_i32_2 = arith.constant 0 : i32
    return %c0_i32, %c0_i32_0, %c0_i32_1 : i32, i32, i32
  }
  func.func @transform_4(%arg0: i32) -> (i32, i32, i32) {
    %c0_i32 = arith.constant 0 : i32
    %c0_i32_0 = arith.constant 0 : i32
    %c0_i32_1 = arith.constant 0 : i32
    %c0_i32_2 = arith.constant 0 : i32
    return %c0_i32, %c0_i32_0, %c0_i32_1 : i32, i32, i32
  }
  func.func @transform_5(%arg0: i32) -> (i32, i32, i32) {
    %c0_i32 = arith.constant 0 : i32
    %c0_i32_0 = arith.constant 0 : i32
    %c0_i32_1 = arith.constant 0 : i32
    %c0_i32_2 = arith.constant 0 : i32
    return %c0_i32, %c0_i32_0, %c0_i32_1 : i32, i32, i32
  }
  func.func @transform_6(%arg0: i32) -> (i32, i32, i32) {
    %c0_i32 = arith.constant 0 : i32
    %c0_i32_0 = arith.constant 0 : i32
    %c0_i32_1 = arith.constant 0 : i32
    %c0_i32_2 = arith.constant 0 : i32
    return %c0_i32, %c0_i32_0, %c0_i32_1 : i32, i32, i32
  }
  func.func @transform_7(%arg0: i32) -> (i32, i32, i32) {
    %c0_i32 = arith.constant 0 : i32
    %c0_i32_0 = arith.constant 0 : i32
    %c0_i32_1 = arith.constant 0 : i32
    %c0_i32_2 = arith.constant 0 : i32
    return %c0_i32, %c0_i32_0, %c0_i32_1 : i32, i32, i32
  }
  func.func @transform_8(%arg0: i32) -> (i32, i32, i32) {
    %c0_i32 = arith.constant 0 : i32
    %c0_i32_0 = arith.constant 0 : i32
    %c0_i32_1 = arith.constant 0 : i32
    %c0_i32_2 = arith.constant 0 : i32
    return %c0_i32, %c0_i32_0, %c0_i32_1 : i32, i32, i32
  }
  func.func @transform_9(%arg0: i32) -> (i32, i32) {
    %c0_i32 = arith.constant 0 : i32
    %c0_i32_0 = arith.constant 0 : i32
    %c0_i32_1 = arith.constant 0 : i32
    return %c0_i32, %c0_i32_0 : i32, i32
  }
  func.func @transform_10(%arg0: i32) -> (i32, i32) {
    %c0_i32 = arith.constant 0 : i32
    %c0_i32_0 = arith.constant 0 : i32
    %c0_i32_1 = arith.constant 0 : i32
    return %c0_i32, %c0_i32_0 : i32, i32
  }
  func.func @transform_11(%arg0: i32) -> (i32, i32) {
    %c0_i32 = arith.constant 0 : i32
    %c0_i32_0 = arith.constant 0 : i32
    return %arg0, %c0_i32 : i32, i32
  }
}

</mosaic_0001>

<llo_original>
// kernel: tpu_custom_call.1
$region0: #{tpu_custom_call.1}
  #allocation0 [shape = 'u32[]', space=smem, size = 0x4, offset = 0x4, fixed_abs, tag = 'smem constant byte address 0x4 - core index']
  #allocation1 [shape = 'u32[144,128]{1,0:T(1,128)}', space=vmem, size = 0x12000, scoped, tag = 'internal scratch']
  %s0 = inlined_call_operand.hbm [shape: f32[32,128], index: 0, kind: input, shape index: {}]
  %s1 = inlined_call_operand.hbm [shape: bf16[384,128], index: 1, kind: input, shape index: {}]
  %s2 = inlined_call_operand.hbm [shape: f32[1,128], index: 2, kind: input, shape index: {}]
  %s3 = inlined_call_operand.hbm [shape: f32[2,1,128], index: 3, kind: input, shape index: {}]
  %s4 = inlined_call_operand.hbm [shape: f32[2,1,128], index: 4, kind: input, shape index: {}]
  %s5 = inlined_call_operand.hbm [shape: bf16[2,384,128], index: 5, kind: input, shape index: {}]
  %s6 = inlined_call_operand.hbm [shape: f32[2,1,128], index: 6, kind: input, shape index: {}]
  %s7 = inlined_call_operand.hbm [shape: bf16[2,384,128], index: 7, kind: input, shape index: {}]
  %s8 = inlined_call_operand.hbm [shape: f32[2,1,128], index: 8, kind: input, shape index: {}]
  %s9 = inlined_call_operand.hbm [shape: bf16[384,128], index: 9, kind: input, shape index: {}]
  %s10 = inlined_call_operand.hbm [shape: f32[1,128], index: 10, kind: input, shape index: {}]
  %s11 = inlined_call_operand.hbm [shape: f32[32,128], index: 11, kind: output, shape index: {}]
  %s12 = sld [smem:[#allocation0]]
  $region121: #{tpu_custom_call.1} parent=0
    _
  %s14 = ssub.s32 1, %s12
  %s15 = scalar_select 0, %s14, %s12
  $region1: #{tpu_custom_call.1} parent=0
    #allocation2 [shape = 'u8[16384]{0}', space=vmem, size = 0x4000, scoped, tag = 'input window, operand 0']
    #allocation3 [shape = 's32[2]{0}', space=sflag, size = 0x8, scoped, tag = 'scoped memory for tpu_custom_call.1']
    #allocation4 [shape = 's32[2]{0}', space=sflag, size = 0x8, scoped, tag = 'scoped memory for tpu_custom_call.1']
    #allocation5 [shape = 'u8[98304]{0}', space=vmem, size = 0x18000, scoped, tag = 'input window, operand 1, single buffered']
    #allocation6 [shape = 's32[1]{0}', space=sflag, size = 0x4, scoped, tag = 'scoped memory for tpu_custom_call.1']
    #allocation7 [shape = 'u8[512]{0}', space=vmem, size = 0x400, scoped, tag = 'input window, operand 2, single buffered']
    #allocation8 [shape = 'u8[1024]{0}', space=vmem, size = 0x400, scoped, tag = 'input window, operand 3, single buffered']
    #allocation9 [shape = 's32[1]{0}', space=sflag, size = 0x4, scoped, tag = 'scoped memory for tpu_custom_call.1']
    #allocation10 [shape = 'u8[1024]{0}', space=vmem, size = 0x400, scoped, tag = 'input window, operand 4, single buffered']
    #allocation11 [shape = 'u8[196608]{0}', space=vmem, size = 0x30000, scoped, tag = 'input window, operand 5, single buffered']
    #allocation12 [shape = 's32[1]{0}', space=sflag, size = 0x4, scoped, tag = 'scoped memory for tpu_custom_call.1']
    #allocation13 [shape = 'u8[1024]{0}', space=vmem, size = 0x400, scoped, tag = 'input window, operand 6, single buffered']
    #allocation14 [shape = 'u8[196608]{0}', space=vmem, size = 0x30000, scoped, tag = 'input window, operand 7, single buffered']
    #allocation15 [shape = 's32[1]{0}', space=sflag, size = 0x4, scoped, tag = 'scoped memory for tpu_custom_call.1']
    #allocation16 [shape = 'u8[1024]{0}', space=vmem, size = 0x400, scoped, tag = 'input window, operand 8, single buffered']
    #allocation17 [shape = 'u8[98304]{0}', space=vmem, size = 0x18000, scoped, tag = 'input window, operand 9, single buffered']
    #allocation18 [shape = 's32[1]{0}', space=sflag, size = 0x4, scoped, tag = 'scoped memory for tpu_custom_call.1']
    #allocation19 [shape = 'u8[512]{0}', space=vmem, size = 0x400, scoped, tag = 'input window, operand 10, single buffered']
    #allocation20 [shape = 'u8[16384]{0}', space=vmem, size = 0x4000, scoped, tag = 'output window, operand 0']
    %16 = vsyncpa [#allocation3], 0
    %s17 = scalar_lea.sflag [#allocation3], 1
    %18 = vsyncpa %s17, 0
    %19 = vsyncpa [#allocation6], 0
    %20 = vsyncpa [#allocation9], 0
    %21 = vsyncpa [#allocation12], 0
    %22 = vsyncpa [#allocation15], 0
    %23 = vsyncpa [#allocation18], 0
    %24 = vsyncpa [#allocation4], 0
    %s25 = scalar_lea.sflag [#allocation4], 1
    %26 = vsyncpa %s25, 0
    loop: start=0, step=1, limit=4
    $region2: #{tpu_custom_call.1} parent=1 // loop_pre_header
      _
    $region3: #{tpu_custom_call.1} parent=1 // loop_header
      %s28 = sphi 0, %s32
      %p29 = scmp.ge.s32.totalorder %s28, 4
      %s38 = sphi 0, %s40
      %s41 = sphi 0, %s38
      %s42 = sphi 0, %s41
      %s58 = sphi 0, %s42
      %s62 = sphi 0, %s62
      %s64 = sphi 0, %s62
      %s65 = sphi 0, %s64
      %s79 = sphi 0, %s65
      %s83 = sphi 0, %s83
      %s85 = sphi 0, %s83
      %s86 = sphi 0, %s85
      %s100 = sphi 0, %s86
      %s104 = sphi 0, %s104
      %s106 = sphi 0, %s104
      %s107 = sphi 0, %s106
      %s121 = sphi 0, %s107
      %s125 = sphi 0, %s125
      %s127 = sphi 0, %s125
      %s128 = sphi 0, %s127
      %s142 = sphi 0, %s128
      %s146 = sphi 0, %s146
      %s148 = sphi 0, %s146
      %s149 = sphi 0, %s148
      %s163 = sphi 0, %s149
      %s167 = sphi 0, %s167
      %s169 = sphi 0, %s167
      %s170 = sphi 0, %s169
      %s184 = sphi 0, %s170
      %s188 = sphi 0, %s188
      %s190 = sphi 0, %s188
      %s191 = sphi 0, %s190
      %s205 = sphi 0, %s191
      %s209 = sphi 0, %s209
      %s211 = sphi 0, %s209
      %s212 = sphi 0, %s211
      %s226 = sphi 0, %s212
      %s230 = sphi 0, %s230
      %s232 = sphi 0, %s230
      %s233 = sphi 0, %s232
      %s247 = sphi 0, %s233
      %s251 = sphi 0, %s251
      %s253 = sphi 0, %s251
      %s254 = sphi 0, %s253
      %s268 = sphi 0, %s254
      %s274 = sphi 0, %s276
      %s277 = sphi 0, %s274
      %s278 = sphi 0, %s277
      %s294 = sphi 0, %s278
    $region4: #{tpu_custom_call.1} parent=1 // loop_header_branch
      %31 = sbr.rel (%p29) target = $region8
    $region5: #{tpu_custom_call.1} parent=1 // loop_body
      %s33 = ssub.s32 %s28, 1
      %s34 = ssub.s32 %s28, 2
      %s35 = sadd.s32 %s28, 1
      %s36 = ssub.s32 %s28, %s35
      %p37 = scmp.eq.s32.totalorder %s36, 0
      %s39 = sadd.s32 %s38, 1
      %s40 = scalar_select %p37, %s38, %s39
      %p43 = pneg %p37
      %p44 = scmp.eq.s32.totalorder %s28, 1
      %p45 = por %p43, %p44
      %p46 = scmp.ne.s32.totalorder %s38, %s41
      %p47 = scmp.eq.s32.totalorder %s28, 0
      %p48 = por %p46, %p47
      %p49 = scmp.ne.s32.totalorder %s38, %s41
      %p50 = scmp.eq.s32.totalorder %s33, 1
      %p51 = por %p49, %p50
      %p52 = scmp.ne.s32.totalorder %s41, %s42
      %p53 = scmp.eq.s32.totalorder %s33, 0
      %p54 = por %p52, %p53
      %p55 = scmp.ne.s32.totalorder %s41, %s42
      %p56 = scmp.eq.s32.totalorder %s34, 1
      %p57 = por %p55, %p56
      %p59 = scmp.ne.s32.totalorder %s42, %s58
      %p60 = scmp.eq.s32.totalorder %s34, 0
      %p61 = por %p59, %p60
      %s63 = sadd.s32 %s62, 1
      %p66 = scmp.eq.s32.totalorder %s28, 1
      %p67 = scmp.ne.s32.totalorder %s62, %s64
      %p68 = scmp.eq.s32.totalorder %s28, 0
      %p69 = por %p67, %p68
      %p70 = scmp.ne.s32.totalorder %s62, %s64
      %p71 = scmp.eq.s32.totalorder %s33, 1
      %p72 = por %p70, %p71
      %p73 = scmp.ne.s32.totalorder %s64, %s65
      %p74 = scmp.eq.s32.totalorder %s33, 0
      %p75 = por %p73, %p74
      %p76 = scmp.ne.s32.totalorder %s64, %s65
      %p77 = scmp.eq.s32.totalorder %s34, 1
      %p78 = por %p76, %p77
      %p80 = scmp.ne.s32.totalorder %s65, %s79
      %p81 = scmp.eq.s32.totalorder %s34, 0
      %p82 = por %p80, %p81
      %s84 = sadd.s32 %s83, 1
      %p87 = scmp.eq.s32.totalorder %s28, 1
      %p88 = scmp.ne.s32.totalorder %s83, %s85
      %p89 = scmp.eq.s32.totalorder %s28, 0
      %p90 = por %p88, %p89
      %p91 = scmp.ne.s32.totalorder %s83, %s85
      %p92 = scmp.eq.s32.totalorder %s33, 1
      %p93 = por %p91, %p92
      %p94 = scmp.ne.s32.totalorder %s85, %s86
      %p95 = scmp.eq.s32.totalorder %s33, 0
      %p96 = por %p94, %p95
      %p97 = scmp.ne.s32.totalorder %s85, %s86
      %p98 = scmp.eq.s32.totalorder %s34, 1
      %p99 = por %p97, %p98
      %p101 = scmp.ne.s32.totalorder %s86, %s100
      %p102 = scmp.eq.s32.totalorder %s34, 0
      %p103 = por %p101, %p102
      %s105 = sadd.s32 %s104, 1
      %p108 = scmp.eq.s32.totalorder %s28, 1
      %p109 = scmp.ne.s32.totalorder %s104, %s106
      %p110 = scmp.eq.s32.totalorder %s28, 0
      %p111 = por %p109, %p110
      %p112 = scmp.ne.s32.totalorder %s104, %s106
      %p113 = scmp.eq.s32.totalorder %s33, 1
      %p114 = por %p112, %p113
      %p115 = scmp.ne.s32.totalorder %s106, %s107
      %p116 = scmp.eq.s32.totalorder %s33, 0
      %p117 = por %p115, %p116
      %p118 = scmp.ne.s32.totalorder %s106, %s107
      %p119 = scmp.eq.s32.totalorder %s34, 1
      %p120 = por %p118, %p119
      %p122 = scmp.ne.s32.totalorder %s107, %s121
      %p123 = scmp.eq.s32.totalorder %s34, 0
      %p124 = por %p122, %p123
      %s126 = sadd.s32 %s125, 1
      %p129 = scmp.eq.s32.totalorder %s28, 1
      %p130 = scmp.ne.s32.totalorder %s125, %s127
      %p131 = scmp.eq.s32.totalorder %s28, 0
      %p132 = por %p130, %p131
      %p133 = scmp.ne.s32.totalorder %s125, %s127
      %p134 = scmp.eq.s32.totalorder %s33, 1
      %p135 = por %p133, %p134
      %p136 = scmp.ne.s32.totalorder %s127, %s128
      %p137 = scmp.eq.s32.totalorder %s33, 0
      %p138 = por %p136, %p137
      %p139 = scmp.ne.s32.totalorder %s127, %s128
      %p140 = scmp.eq.s32.totalorder %s34, 1
      %p141 = por %p139, %p140
      %p143 = scmp.ne.s32.totalorder %s128, %s142
      %p144 = scmp.eq.s32.totalorder %s34, 0
      %p145 = por %p143, %p144
      %s147 = sadd.s32 %s146, 1
      %p150 = scmp.eq.s32.totalorder %s28, 1
      %p151 = scmp.ne.s32.totalorder %s146, %s148
      %p152 = scmp.eq.s32.totalorder %s28, 0
      %p153 = por %p151, %p152
      %p154 = scmp.ne.s32.totalorder %s146, %s148
      %p155 = scmp.eq.s32.totalorder %s33, 1
      %p156 = por %p154, %p155
      %p157 = scmp.ne.s32.totalorder %s148, %s149
      %p158 = scmp.eq.s32.totalorder %s33, 0
      %p159 = por %p157, %p158
      %p160 = scmp.ne.s32.totalorder %s148, %s149
      %p161 = scmp.eq.s32.totalorder %s34, 1
      %p162 = por %p160, %p161
      %p164 = scmp.ne.s32.totalorder %s149, %s163
      %p165 = scmp.eq.s32.totalorder %s34, 0
      %p166 = por %p164, %p165
      %s168 = sadd.s32 %s167, 1
      %p171 = scmp.eq.s32.totalorder %s28, 1
      %p172 = scmp.ne.s32.totalorder %s167, %s169
      %p173 = scmp.eq.s32.totalorder %s28, 0
      %p174 = por %p172, %p173
      %p175 = scmp.ne.s32.totalorder %s167, %s169
      %p176 = scmp.eq.s32.totalorder %s33, 1
      %p177 = por %p175, %p176
      %p178 = scmp.ne.s32.totalorder %s169, %s170
      %p179 = scmp.eq.s32.totalorder %s33, 0
      %p180 = por %p178, %p179
      %p181 = scmp.ne.s32.totalorder %s169, %s170
      %p182 = scmp.eq.s32.totalorder %s34, 1
      %p183 = por %p181, %p182
      %p185 = scmp.ne.s32.totalorder %s170, %s184
      %p186 = scmp.eq.s32.totalorder %s34, 0
      %p187 = por %p185, %p186
      %s189 = sadd.s32 %s188, 1
      %p192 = scmp.eq.s32.totalorder %s28, 1
      %p193 = scmp.ne.s32.totalorder %s188, %s190
      %p194 = scmp.eq.s32.totalorder %s28, 0
      %p195 = por %p193, %p194
      %p196 = scmp.ne.s32.totalorder %s188, %s190
      %p197 = scmp.eq.s32.totalorder %s33, 1
      %p198 = por %p196, %p197
      %p199 = scmp.ne.s32.totalorder %s190, %s191
      %p200 = scmp.eq.s32.totalorder %s33, 0
      %p201 = por %p199, %p200
      %p202 = scmp.ne.s32.totalorder %s190, %s191
      %p203 = scmp.eq.s32.totalorder %s34, 1
      %p204 = por %p202, %p203
      %p206 = scmp.ne.s32.totalorder %s191, %s205
      %p207 = scmp.eq.s32.totalorder %s34, 0
      %p208 = por %p206, %p207
      %s210 = sadd.s32 %s209, 1
      %p213 = scmp.eq.s32.totalorder %s28, 1
      %p214 = scmp.ne.s32.totalorder %s209, %s211
      %p215 = scmp.eq.s32.totalorder %s28, 0
      %p216 = por %p214, %p215
      %p217 = scmp.ne.s32.totalorder %s209, %s211
      %p218 = scmp.eq.s32.totalorder %s33, 1
      %p219 = por %p217, %p218
      %p220 = scmp.ne.s32.totalorder %s211, %s212
      %p221 = scmp.eq.s32.totalorder %s33, 0
      %p222 = por %p220, %p221
      %p223 = scmp.ne.s32.totalorder %s211, %s212
      %p224 = scmp.eq.s32.totalorder %s34, 1
      %p225 = por %p223, %p224
      %p227 = scmp.ne.s32.totalorder %s212, %s226
      %p228 = scmp.eq.s32.totalorder %s34, 0
      %p229 = por %p227, %p228
      %s231 = sadd.s32 %s230, 1
      %p234 = scmp.eq.s32.totalorder %s28, 1
      %p235 = scmp.ne.s32.totalorder %s230, %s232
      %p236 = scmp.eq.s32.totalorder %s28, 0
      %p237 = por %p235, %p236
      %p238 = scmp.ne.s32.totalorder %s230, %s232
      %p239 = scmp.eq.s32.totalorder %s33, 1
      %p240 = por %p238, %p239
      %p241 = scmp.ne.s32.totalorder %s232, %s233
      %p242 = scmp.eq.s32.totalorder %s33, 0
      %p243 = por %p241, %p242
      %p244 = scmp.ne.s32.totalorder %s232, %s233
      %p245 = scmp.eq.s32.totalorder %s34, 1
      %p246 = por %p244, %p245
      %p248 = scmp.ne.s32.totalorder %s233, %s247
      %p249 = scmp.eq.s32.totalorder %s34, 0
      %p250 = por %p248, %p249
      %s252 = sadd.s32 %s251, 1
      %p255 = scmp.eq.s32.totalorder %s28, 1
      %p256 = scmp.ne.s32.totalorder %s251, %s253
      %p257 = scmp.eq.s32.totalorder %s28, 0
      %p258 = por %p256, %p257
      %p259 = scmp.ne.s32.totalorder %s251, %s253
      %p260 = scmp.eq.s32.totalorder %s33, 1
      %p261 = por %p259, %p260
      %p262 = scmp.ne.s32.totalorder %s253, %s254
      %p263 = scmp.eq.s32.totalorder %s33, 0
      %p264 = por %p262, %p263
      %p265 = scmp.ne.s32.totalorder %s253, %s254
      %p266 = scmp.eq.s32.totalorder %s34, 1
      %p267 = por %p265, %p266
      %p269 = scmp.ne.s32.totalorder %s254, %s268
      %p270 = scmp.eq.s32.totalorder %s34, 0
      %p271 = por %p269, %p270
      %s272 = ssub.s32 %s28, %s35
      %p273 = scmp.eq.s32.totalorder %s272, 0
      %s275 = sadd.s32 %s274, 1
      %s276 = scalar_select %p273, %s274, %s275
      %p279 = pneg %p273
      %p280 = scmp.eq.s32.totalorder %s28, 1
      %p281 = por %p279, %p280
      %p282 = scmp.ne.s32.totalorder %s274, %s277
      %p283 = scmp.eq.s32.totalorder %s28, 0
      %p284 = por %p282, %p283
      %p285 = scmp.ne.s32.totalorder %s274, %s277
      %p286 = scmp.eq.s32.totalorder %s33, 1
      %p287 = por %p285, %p286
      %p288 = scmp.ne.s32.totalorder %s277, %s278
      %p289 = scmp.eq.s32.totalorder %s33, 0
      %p290 = por %p288, %p289
      %p291 = scmp.ne.s32.totalorder %s277, %s278
      %p292 = scmp.eq.s32.totalorder %s34, 1
      %p293 = por %p291, %p292
      %p295 = scmp.ne.s32.totalorder %s278, %s294
      %p296 = scmp.eq.s32.totalorder %s34, 0
      %p297 = por %p295, %p296
      %p298 = scmp.le.s32.totalorder 1, %s28
      %p299 = scmp.lt.s32.totalorder %s28, 3
      %p300 = pnand %p298, %p299
      %p301 = pneg %p300
      // Predicated region
      $region9: #{tpu_custom_call.1} parent=5 // pred_check
        _
      $region10: #{tpu_custom_call.1} parent=5 // pred_check_branch
        %303 = sbr.rel (%p300) target = $region12
      $region11: #{tpu_custom_call.1} parent=5 // pred_region
        %s304 = ssub.s32 %s28, 1
        // Predicated region
        $region13: #{tpu_custom_call.1} parent=11 // pred_check
          %p305 = pneg %p75
        $region14: #{tpu_custom_call.1} parent=11 // pred_check_branch
          %307 = sbr.rel (%p305) target = $region16
        $region15: #{tpu_custom_call.1} parent=11 // pred_region
          %s309 = ssub.s32 3072, 3072
          %310 = vsyncadd [#allocation6], %s309
          %s311 = sshll.u32 [#allocation5], 4
          %s312 = int_to_ptr.vmem [resolvable:$true] %s311
          %317 = dma.hbm_to_vmem [thread:$0]  %s1, 3072, %s312, [#allocation6], 64, 64, 4
        $region16: #{tpu_custom_call.1} parent=11 // pred_fallthru
          _
        // Predicated region
        $region17: #{tpu_custom_call.1} parent=11 // pred_check
          %p318 = pneg %p96
        $region18: #{tpu_custom_call.1} parent=11 // pred_check_branch
          %320 = sbr.rel (%p318) target = $region20
        $region19: #{tpu_custom_call.1} parent=11 // pred_region
          %s322 = ssub.s32 16, 16
          %323 = vsyncadd [#allocation6], %s322
          %s325 = sshll.u32 [#allocation7], 4
          %s326 = int_to_ptr.vmem [resolvable:$true] %s325
          %328 = dma.hbm_to_vmem [thread:$0]  %s2, 16, %s326, [#allocation6]
        $region20: #{tpu_custom_call.1} parent=11 // pred_fallthru
          _
        // Predicated region
        $region21: #{tpu_custom_call.1} parent=11 // pred_check
          %p329 = pneg %p117
        $region22: #{tpu_custom_call.1} parent=11 // pred_check_branch
          %331 = sbr.rel (%p329) target = $region24
        $region23: #{tpu_custom_call.1} parent=11 // pred_region
          %s333 = ssub.s32 32, 32
          %334 = vsyncadd [#allocation9], %s333
          %s335 = sshll.u32 [#allocation8], 4
          %s336 = int_to_ptr.vmem [resolvable:$true] %s335
          %341 = dma.hbm_to_vmem [thread:$0]  %s3, 32, %s336, [#allocation9], 16, 16, 1
        $region24: #{tpu_custom_call.1} parent=11 // pred_fallthru
          _
        // Predicated region
        $region25: #{tpu_custom_call.1} parent=11 // pred_check
          %p342 = pneg %p138
        $region26: #{tpu_custom_call.1} parent=11 // pred_check_branch
          %344 = sbr.rel (%p342) target = $region28
        $region27: #{tpu_custom_call.1} parent=11 // pred_region
          %s346 = ssub.s32 32, 32
          %347 = vsyncadd [#allocation9], %s346
          %s348 = sshll.u32 [#allocation10], 4
          %s349 = int_to_ptr.vmem [resolvable:$true] %s348
          %354 = dma.hbm_to_vmem [thread:$0]  %s4, 32, %s349, [#allocation9], 16, 16, 1
        $region28: #{tpu_custom_call.1} parent=11 // pred_fallthru
          _
        // Predicated region
        $region29: #{tpu_custom_call.1} parent=11 // pred_check
          %p355 = pneg %p159
        $region30: #{tpu_custom_call.1} parent=11 // pred_check_branch
          %357 = sbr.rel (%p355) target = $region32
        $region31: #{tpu_custom_call.1} parent=11 // pred_region
          %s359 = ssub.s32 6144, 6144
          %360 = vsyncadd [#allocation12], %s359
          %s361 = sshll.u32 [#allocation11], 4
          %s362 = int_to_ptr.vmem [resolvable:$true] %s361
          %367 = dma.hbm_to_vmem [thread:$0]  %s5, 6144, %s362, [#allocation12], 64, 64, 4
        $region32: #{tpu_custom_call.1} parent=11 // pred_fallthru
          _
        // Predicated region
        $region33: #{tpu_custom_call.1} parent=11 // pred_check
          %p368 = pneg %p180
        $region34: #{tpu_custom_call.1} parent=11 // pred_check_branch
          %370 = sbr.rel (%p368) target = $region36
        $region35: #{tpu_custom_call.1} parent=11 // pred_region
          %s372 = ssub.s32 32, 32
          %373 = vsyncadd [#allocation12], %s372
          %s374 = sshll.u32 [#allocation13], 4
          %s375 = int_to_ptr.vmem [resolvable:$true] %s374
          %380 = dma.hbm_to_vmem [thread:$0]  %s6, 32, %s375, [#allocation12], 16, 16, 1
        $region36: #{tpu_custom_call.1} parent=11 // pred_fallthru
          _
        // Predicated region
        $region37: #{tpu_custom_call.1} parent=11 // pred_check
          %p381 = pneg %p201
        $region38: #{tpu_custom_call.1} parent=11 // pred_check_branch
          %383 = sbr.rel (%p381) target = $region40
        $region39: #{tpu_custom_call.1} parent=11 // pred_region
          %s385 = ssub.s32 6144, 6144
          %386 = vsyncadd [#allocation15], %s385
          %s387 = sshll.u32 [#allocation14], 4
          %s388 = int_to_ptr.vmem [resolvable:$true] %s387
          %393 = dma.hbm_to_vmem [thread:$0]  %s7, 6144, %s388, [#allocation15], 64, 64, 4
        $region40: #{tpu_custom_call.1} parent=11 // pred_fallthru
          _
        // Predicated region
        $region41: #{tpu_custom_call.1} parent=11 // pred_check
          %p394 = pneg %p222
        $region42: #{tpu_custom_call.1} parent=11 // pred_check_branch
          %396 = sbr.rel (%p394) target = $region44
        $region43: #{tpu_custom_call.1} parent=11 // pred_region
          %s398 = ssub.s32 32, 32
          %399 = vsyncadd [#allocation15], %s398
          %s400 = sshll.u32 [#allocation16], 4
          %s401 = int_to_ptr.vmem [resolvable:$true] %s400
          %406 = dma.hbm_to_vmem [thread:$0]  %s8, 32, %s401, [#allocation15], 16, 16, 1
        $region44: #{tpu_custom_call.1} parent=11 // pred_fallthru
          _
        // Predicated region
        $region45: #{tpu_custom_call.1} parent=11 // pred_check
          %p407 = pneg %p243
        $region46: #{tpu_custom_call.1} parent=11 // pred_check_branch
          %409 = sbr.rel (%p407) target = $region48
        $region47: #{tpu_custom_call.1} parent=11 // pred_region
          %s411 = ssub.s32 3072, 3072
          %412 = vsyncadd [#allocation18], %s411
          %s413 = sshll.u32 [#allocation17], 4
          %s414 = int_to_ptr.vmem [resolvable:$true] %s413
          %419 = dma.hbm_to_vmem [thread:$0]  %s9, 3072, %s414, [#allocation18], 64, 64, 4
        $region48: #{tpu_custom_call.1} parent=11 // pred_fallthru
          _
        // Predicated region
        $region49: #{tpu_custom_call.1} parent=11 // pred_check
          %p420 = pneg %p264
        $region50: #{tpu_custom_call.1} parent=11 // pred_check_branch
          %422 = sbr.rel (%p420) target = $region52
        $region51: #{tpu_custom_call.1} parent=11 // pred_region
          %s424 = ssub.s32 16, 16
          %425 = vsyncadd [#allocation18], %s424
          %s427 = sshll.u32 [#allocation19], 4
          %s428 = int_to_ptr.vmem [resolvable:$true] %s427
          %430 = dma.hbm_to_vmem [thread:$0]  %s10, 16, %s428, [#allocation18]
        $region52: #{tpu_custom_call.1} parent=11 // pred_fallthru
          _
      $region12: #{tpu_custom_call.1} parent=5 // pred_fallthru
        _
      %p431 = scmp.lt.s32.totalorder %s28, 2
      // Predicated region
      $region53: #{tpu_custom_call.1} parent=5 // pred_check
        %p432 = pneg %p431
      $region54: #{tpu_custom_call.1} parent=5 // pred_check_branch
        %434 = sbr.rel (%p432) target = $region56
      $region55: #{tpu_custom_call.1} parent=5 // pred_region
        // Predicated region
        $region57: #{tpu_custom_call.1} parent=55 // pred_check
          %p435 = pneg %p48
        $region58: #{tpu_custom_call.1} parent=55 // pred_check_branch
          %437 = sbr.rel (%p435) target = $region60
        $region59: #{tpu_custom_call.1} parent=55 // pred_region
          %s438 = sand.u32 %s38, 1
          %s439 = scalar_lea.sflag [#allocation3], %s438
          %s440 = sand.u32 %s38, 1
          %s441 = smul.addr %s440, 16
          %s442 = scalar_lea.vmem [#allocation2], %s441
          %s443 = smul.u32 2, %s28
          %s445 = ssub.s32 256, 256
          %446 = vsyncadd %s439, %s445
          %s447 = smul.addr %s443, 128
          %s448 = scalar_lea.hbm %s0, %s447
          %s449 = sshll.u32 %s442, 4
          %s450 = int_to_ptr.vmem [resolvable:$true] %s449
          %455 = dma.hbm_to_vmem [thread:$0]  %s448, 256, %s450, %s439, 128, 128, 8
        $region60: #{tpu_custom_call.1} parent=55 // pred_fallthru
          _
      $region56: #{tpu_custom_call.1} parent=5 // pred_fallthru
        _
      %p456 = scmp.le.s32.totalorder 1, %s28
      %p457 = scmp.lt.s32.totalorder %s28, 3
      %p458 = pnand %p456, %p457
      %p459 = pneg %p458
      // Predicated region
      $region61: #{tpu_custom_call.1} parent=5 // pred_check
        _
      $region62: #{tpu_custom_call.1} parent=5 // pred_check_branch
        %461 = sbr.rel (%p458) target = $region64
      $region63: #{tpu_custom_call.1} parent=5 // pred_region
        %s462 = ssub.s32 %s28, 1
        %s463 = sand.u32 %s41, 1
        %s464 = scalar_lea.sflag [#allocation3], %s463
        %s465 = sand.u32 %s41, 1
        %s466 = smul.addr %s465, 16
        %s467 = scalar_lea.vmem [#allocation2], %s466
        // Predicated region
        $region65: #{tpu_custom_call.1} parent=63 // pred_check
          %p468 = pneg %p54
        $region66: #{tpu_custom_call.1} parent=63 // pred_check_branch
          %470 = sbr.rel (%p468) target = $region68
        $region67: #{tpu_custom_call.1} parent=63 // pred_region
          %471 = dma.done %s464, 256
        $region68: #{tpu_custom_call.1} parent=63 // pred_fallthru
          _
        // Predicated region
        $region69: #{tpu_custom_call.1} parent=63 // pred_check
          %p472 = pneg %p75
        $region70: #{tpu_custom_call.1} parent=63 // pred_check_branch
          %474 = sbr.rel (%p472) target = $region72
        $region71: #{tpu_custom_call.1} parent=63 // pred_region
          %475 = dma.done [#allocation6], 3072
        $region72: #{tpu_custom_call.1} parent=63 // pred_fallthru
          _
        // Predicated region
        $region73: #{tpu_custom_call.1} parent=63 // pred_check
          %p476 = pneg %p96
        $region74: #{tpu_custom_call.1} parent=63 // pred_check_branch
          %478 = sbr.rel (%p476) target = $region76
        $region75: #{tpu_custom_call.1} parent=63 // pred_region
          %479 = dma.done [#allocation6], 16
        $region76: #{tpu_custom_call.1} parent=63 // pred_fallthru
          _
        // Predicated region
        $region77: #{tpu_custom_call.1} parent=63 // pred_check
          %p480 = pneg %p117
        $region78: #{tpu_custom_call.1} parent=63 // pred_check_branch
          %482 = sbr.rel (%p480) target = $region80
        $region79: #{tpu_custom_call.1} parent=63 // pred_region
          %483 = dma.done [#allocation9], 32
        $region80: #{tpu_custom_call.1} parent=63 // pred_fallthru
          _
        // Predicated region
        $region81: #{tpu_custom_call.1} parent=63 // pred_check
          %p484 = pneg %p138
        $region82: #{tpu_custom_call.1} parent=63 // pred_check_branch
          %486 = sbr.rel (%p484) target = $region84
        $region83: #{tpu_custom_call.1} parent=63 // pred_region
          %487 = dma.done [#allocation9], 32
        $region84: #{tpu_custom_call.1} parent=63 // pred_fallthru
          _
        // Predicated region
        $region85: #{tpu_custom_call.1} parent=63 // pred_check
          %p488 = pneg %p159
        $region86: #{tpu_custom_call.1} parent=63 // pred_check_branch
          %490 = sbr.rel (%p488) target = $region88
        $region87: #{tpu_custom_call.1} parent=63 // pred_region
          %491 = dma.done [#allocation12], 6144
        $region88: #{tpu_custom_call.1} parent=63 // pred_fallthru
          _
        // Predicated region
        $region89: #{tpu_custom_call.1} parent=63 // pred_check
          %p492 = pneg %p180
        $region90: #{tpu_custom_call.1} parent=63 // pred_check_branch
          %494 = sbr.rel (%p492) target = $region92
        $region91: #{tpu_custom_call.1} parent=63 // pred_region
          %495 = dma.done [#allocation12], 32
        $region92: #{tpu_custom_call.1} parent=63 // pred_fallthru
          _
        // Predicated region
        $region93: #{tpu_custom_call.1} parent=63 // pred_check
          %p496 = pneg %p201
        $region94: #{tpu_custom_call.1} parent=63 // pred_check_branch
          %498 = sbr.rel (%p496) target = $region96
        $region95: #{tpu_custom_call.1} parent=63 // pred_region
          %499 = dma.done [#allocation15], 6144
        $region96: #{tpu_custom_call.1} parent=63 // pred_fallthru
          _
        // Predicated region
        $region97: #{tpu_custom_call.1} parent=63 // pred_check
          %p500 = pneg %p222
        $region98: #{tpu_custom_call.1} parent=63 // pred_check_branch
          %502 = sbr.rel (%p500) target = $region100
        $region99: #{tpu_custom_call.1} parent=63 // pred_region
          %503 = dma.done [#allocation15], 32
        $region100: #{tpu_custom_call.1} parent=63 // pred_fallthru
          _
        // Predicated region
        $region101: #{tpu_custom_call.1} parent=63 // pred_check
          %p504 = pneg %p243
        $region102: #{tpu_custom_call.1} parent=63 // pred_check_branch
          %506 = sbr.rel (%p504) target = $region104
        $region103: #{tpu_custom_call.1} parent=63 // pred_region
          %507 = dma.done [#allocation18], 3072
        $region104: #{tpu_custom_call.1} parent=63 // pred_fallthru
          _
        // Predicated region
        $region105: #{tpu_custom_call.1} parent=63 // pred_check
          %p508 = pneg %p264
        $region106: #{tpu_custom_call.1} parent=63 // pred_check_branch
          %510 = sbr.rel (%p508) target = $region108
        $region107: #{tpu_custom_call.1} parent=63 // pred_region
          %511 = dma.done [#allocation18], 16
        $region108: #{tpu_custom_call.1} parent=63 // pred_fallthru
          _
        %s512 = sand.u32 %s41, 1
        %s513 = scalar_lea.sflag [#allocation3], %s512
        %s514 = sand.u32 %s41, 1
        %s515 = smul.addr %s514, 16
        %s516 = scalar_lea.vmem [#allocation2], %s515
        %p517 = pneg %p54
        %p518 = pneg %p51
        %p519 = pneg %p75
        %p520 = pneg %p72
        %p521 = pneg %p96
        %p522 = pneg %p93
        %p523 = pneg %p117
        %p524 = pneg %p114
        %p525 = pneg %p138
        %p526 = pneg %p135
        %p527 = pneg %p159
        %p528 = pneg %p156
        %p529 = pneg %p180
        %p530 = pneg %p177
        %p531 = pneg %p201
        %p532 = pneg %p198
        %p533 = pneg %p222
        %p534 = pneg %p219
        %p535 = pneg %p243
        %p536 = pneg %p240
        %p537 = pneg %p264
        %p538 = pneg %p261
        %p539 = pneg %p290
        %p540 = pneg %p287
        %s541 = sand.u32 %s277, 1
        %s542 = scalar_lea.sflag [#allocation4], %s541
        %s543 = sand.u32 %s277, 1
        %s544 = smul.addr %s543, 16
        %s545 = scalar_lea.vmem [#allocation20], %s544
        %s546 = smul.u32 2, %s33
        %s547 = smul.u32 2, %s33
        %v549 = vlaneseq
        %v550 = vshrl.u32 %v549, 7
        %v551 = vadd.s32 %v550, 8
        %vm552 = vcmp.lt.s32.totalorder %v550, 0
        %v553 = vsub.s32 0, %v550
        %v554 = vsel %vm552, %v553, %v550
        %v555 = vshrl.u32 %v554, 4
        %v556 = vand.u32 %v554, 15
        %v557 = vsub.s32 0, %v556
        %v558 = vsel %vm552, %v557, %v556
        %vm559 = vcmp.lt.s32.totalorder %v551, 0
        %v560 = vsub.s32 0, %v551
        %v561 = vsel %vm559, %v560, %v551
        %v562 = vshrl.u32 %v561, 4
        %v563 = vand.u32 %v561, 15
        %v564 = vsub.s32 0, %v563
        %v565 = vsel %vm559, %v564, %v563
        %vm566 = vcmp.ne.s32.totalorder %v558, 0
        %vm567 = vcmp.ne.s32.totalorder %v565, 0
        %vm568 = vcmp.lt.s32.totalorder %v558, 0
        %vm569 = vcmp.lt.s32.totalorder %v565, 0
        %vm570 = vmand %vm568, %vm566
        %vm571 = vmand %vm569, %vm567
        %v572 = vadd.s32 %v558, 16
        %v573 = vadd.s32 %v565, 16
        %v574 = vsel %vm570, %v572, %v558
        %v575 = vsel %vm571, %v573, %v565
        %v576 = vadd.s32 %v574, 4294967295
        %v577 = vadd.s32 %v575, 4294967295
        %vm578 = vcmp.ge.s32.totalorder %v576, 0
        %vm579 = vcmp.ge.s32.totalorder %v577, 0
        %vm580 = vcmp.lt.s32.totalorder %v576, 16
        %vm581 = vcmp.lt.s32.totalorder %v577, 16
        %vm582 = vmand %vm578, %vm580
        %vm583 = vmand %vm579, %vm581
        %v584 = vsel %vm582, 1, 0
        %v585 = vsel %vm583, 1, 0
        %v586 = vcvt.s32.f32 %v584
        %v587 = vcvt.s32.f32 %v585
        %v588 = vadd.s32 %v574, 1
        %v589 = vadd.s32 %v575, 1
        %vm590 = vcmp.ge.s32.totalorder %v588, 0
        %vm591 = vcmp.ge.s32.totalorder %v589, 0
        %vm592 = vcmp.lt.s32.totalorder %v588, 16
        %vm593 = vcmp.lt.s32.totalorder %v589, 16
        %vm594 = vmand %vm590, %vm592
        %vm595 = vmand %vm591, %vm593
        %v596 = vsel %vm594, 1, 0
        %v597 = vsel %vm595, 1, 0
        %v598 = vcvt.s32.f32 %v596
        %v599 = vcvt.s32.f32 %v597
        %v600 = vld [vmem:[%s467] sm:$0xff]
        %v601 = vld [vmem:[%s467 + $0x8] sm:$0xff]
        %v602 = vld [vmem:[#allocation5] sm:$0xf]
        %v603 = vld [vmem:[#allocation5 + $0x4] sm:$0xf]
        %v604 = vld [vmem:[#allocation5 + $0x8] sm:$0xf]
        %v605 = vld [vmem:[#allocation5 + $0xc] sm:$0xf]
        %v606 = vld [vmem:[#allocation5 + $0x10] sm:$0xf]
        %v607 = vld [vmem:[#allocation5 + $0x14] sm:$0xf]
        %v608 = vld [vmem:[#allocation5 + $0x18] sm:$0xf]
        %v609 = vld [vmem:[#allocation5 + $0x1c] sm:$0xf]
        %v610 = vld [vmem:[#allocation5 + $0x20] sm:$0xf]
        %v611 = vld [vmem:[#allocation5 + $0x24] sm:$0xf]
        %v612 = vld [vmem:[#allocation5 + $0x28] sm:$0xf]
        %v613 = vld [vmem:[#allocation5 + $0x2c] sm:$0xf]
        %v614 = vld [vmem:[#allocation5 + $0x30] sm:$0xf]
        %v615 = vld [vmem:[#allocation5 + $0x34] sm:$0xf]
        %v616 = vld [vmem:[#allocation5 + $0x38] sm:$0xf]
        %v617 = vld [vmem:[#allocation5 + $0x3c] sm:$0xf]
        %v618 = vld [vmem:[#allocation5 + $0x40] sm:$0xf]
        %v619 = vld [vmem:[#allocation5 + $0x44] sm:$0xf]
        %v620 = vld [vmem:[#allocation5 + $0x48] sm:$0xf]
        %v621 = vld [vmem:[#allocation5 + $0x4c] sm:$0xf]
        %v622 = vld [vmem:[#allocation5 + $0x50] sm:$0xf]
        %v623 = vld [vmem:[#allocation5 + $0x54] sm:$0xf]
        %v624 = vld [vmem:[#allocation5 + $0x58] sm:$0xf]
        %v625 = vld [vmem:[#allocation5 + $0x5c] sm:$0xf]
        %v626 = vld [vmem:[#allocation5 + $0x60] sm:$0xf]
        %v627 = vld [vmem:[#allocation5 + $0x64] sm:$0xf]
        %v628 = vld [vmem:[#allocation5 + $0x68] sm:$0xf]
        %v629 = vld [vmem:[#allocation5 + $0x6c] sm:$0xf]
        %v630 = vld [vmem:[#allocation5 + $0x70] sm:$0xf]
        %v631 = vld [vmem:[#allocation5 + $0x74] sm:$0xf]
        %v632 = vld [vmem:[#allocation5 + $0x78] sm:$0xf]
        %v633 = vld [vmem:[#allocation5 + $0x7c] sm:$0xf]
        %v634 = vld [vmem:[#allocation5 + $0x80] sm:$0xf]
        %v635 = vld [vmem:[#allocation5 + $0x84] sm:$0xf]
        %v636 = vld [vmem:[#allocation5 + $0x88] sm:$0xf]
        %v637 = vld [vmem:[#allocation5 + $0x8c] sm:$0xf]
        %v638 = vld [vmem:[#allocation5 + $0x90] sm:$0xf]
        %v639 = vld [vmem:[#allocation5 + $0x94] sm:$0xf]
        %v640 = vld [vmem:[#allocation5 + $0x98] sm:$0xf]
        %v641 = vld [vmem:[#allocation5 + $0x9c] sm:$0xf]
        %v642 = vld [vmem:[#allocation5 + $0xa0] sm:$0xf]
        %v643 = vld [vmem:[#allocation5 + $0xa4] sm:$0xf]
        %v644 = vld [vmem:[#allocation5 + $0xa8] sm:$0xf]
        %v645 = vld [vmem:[#allocation5 + $0xac] sm:$0xf]
        %v646 = vld [vmem:[#allocation5 + $0xb0] sm:$0xf]
        %v647 = vld [vmem:[#allocation5 + $0xb4] sm:$0xf]
        %v648 = vld [vmem:[#allocation5 + $0xb8] sm:$0xf]
        %v649 = vld [vmem:[#allocation5 + $0xbc] sm:$0xf]
        %v650 = vld [vmem:[#allocation7] sm:$0x1]
        %v651 = vrot.slane %v600, 7
        %v652 = vrot.slane %v601, 7
        %vm653 = vcmp.lt.s32.totalorder %v550, 1
        %v654 = vsel %vm653, %v651, %v652
        %v655 = vsel %vm653, %v652, %v651
        %v656 = vmul.f32 %v655, %v586
        %v657 = vmul.f32 %v654, %v587
        %v658 = vrot.slane %v600, 1
        %v659 = vrot.slane %v601, 1
        %vm660 = vcmp.lt.s32.totalorder %v550, 7
        %v661 = vsel %vm660, %v658, %v659
        %v662 = vsel %vm660, %v659, %v658
        %v663 = vmul.f32 %v661, %v598
        %v664 = vmul.f32 %v662, %v599
        %v665 = vpack.c.bf16 %v657, %v656
        %v666 = vpack.c.bf16 %v601, %v600
        %v667 = vpack.c.bf16 %v664, %v663
        %v669 = vlaneseq
        %v670 = vshrl.u32 %v669, 7
        %v671 = vsub.s32 0, %v670
        %v672 = vrot.slane %v650, %v671
        %v722 = vunpack.c.l.b16 %v602
        %v723 = vunpack.c.l.b16 %v603
        %v724 = vunpack.c.l.b16 %v604
        %v725 = vunpack.c.l.b16 %v605
        %v726 = vunpack.c.l.b16 %v606
        %v727 = vunpack.c.l.b16 %v607
        %v728 = vunpack.c.l.b16 %v608
        %v729 = vunpack.c.l.b16 %v609
        %v730 = vunpack.c.l.b16 %v610
        %v731 = vunpack.c.l.b16 %v611
        %v732 = vunpack.c.l.b16 %v612
        %v733 = vunpack.c.l.b16 %v613
        %v734 = vunpack.c.l.b16 %v614
        %v735 = vunpack.c.l.b16 %v615
        %v736 = vunpack.c.l.b16 %v616
        %v737 = vunpack.c.l.b16 %v617
        %v738 = vunpack.c.l.b16 %v618
        %v739 = vunpack.c.l.b16 %v619
        %v740 = vunpack.c.l.b16 %v620
        %v741 = vunpack.c.l.b16 %v621
        %v742 = vunpack.c.l.b16 %v622
        %v743 = vunpack.c.l.b16 %v623
        %v744 = vunpack.c.l.b16 %v624
        %v745 = vunpack.c.l.b16 %v625
        %v746 = vunpack.c.l.b16 %v626
        %v747 = vunpack.c.l.b16 %v627
        %v748 = vunpack.c.l.b16 %v628
        %v749 = vunpack.c.l.b16 %v629
        %v750 = vunpack.c.l.b16 %v630
        %v751 = vunpack.c.l.b16 %v631
        %v752 = vunpack.c.l.b16 %v632
        %v753 = vunpack.c.l.b16 %v633
        %v754 = vunpack.c.l.b16 %v634
        %v755 = vunpack.c.l.b16 %v635
        %v756 = vunpack.c.l.b16 %v636
        %v757 = vunpack.c.l.b16 %v637
        %v758 = vunpack.c.l.b16 %v638
        %v759 = vunpack.c.l.b16 %v639
        %v760 = vunpack.c.l.b16 %v640
        %v761 = vunpack.c.l.b16 %v641
        %v762 = vunpack.c.l.b16 %v642
        %v763 = vunpack.c.l.b16 %v643
        %v764 = vunpack.c.l.b16 %v644
        %v765 = vunpack.c.l.b16 %v645
        %v766 = vunpack.c.l.b16 %v646
        %v767 = vunpack.c.l.b16 %v647
        %v768 = vunpack.c.l.b16 %v648
        %v769 = vunpack.c.l.b16 %v649
        %v770 = vpack.c.b16 %v723, %v722
        %v771 = vpack.c.b16 %v725, %v724
        %v772 = vpack.c.b16 %v727, %v726
        %v773 = vpack.c.b16 %v729, %v728
        %v774 = vpack.c.b16 %v731, %v730
        %v775 = vpack.c.b16 %v733, %v732
        %v776 = vpack.c.b16 %v735, %v734
        %v777 = vpack.c.b16 %v737, %v736
        %v778 = vpack.c.b16 %v739, %v738
        %v779 = vpack.c.b16 %v741, %v740
        %v780 = vpack.c.b16 %v743, %v742
        %v781 = vpack.c.b16 %v745, %v744
        %v782 = vpack.c.b16 %v747, %v746
        %v783 = vpack.c.b16 %v749, %v748
        %v784 = vpack.c.b16 %v751, %v750
        %v785 = vpack.c.b16 %v753, %v752
        %v786 = vpack.c.b16 %v755, %v754
        %v787 = vpack.c.b16 %v757, %v756
        %v788 = vpack.c.b16 %v759, %v758
        %v789 = vpack.c.b16 %v761, %v760
        %v790 = vpack.c.b16 %v763, %v762
        %v791 = vpack.c.b16 %v765, %v764
        %v792 = vpack.c.b16 %v767, %v766
        %v793 = vpack.c.b16 %v769, %v768
        %818 = vmatprep.subr.bf16.mxu0 0
        %819 = vmatpush1.bf16.msra.mxu0 %v770
        %820 = vmatprep.subr.bf16.mxu0 0
        %821 = vmatpush1.bf16.msra.mxu0 %v771
        %822 = vmatprep.subr.bf16.mxu0 0
        %823 = vmatpush1.bf16.msra.mxu0 %v772
        %824 = vmatprep.subr.bf16.mxu0 0
        %825 = vmatpush1.bf16.msra.mxu0 %v773
        %826 = vmatprep.subr.bf16.mxu0 0
        %827 = vmatpush1.bf16.msra.mxu0 %v774
        %828 = vmatprep.subr.bf16.mxu0 0
        %829 = vmatpush1.bf16.msra.mxu0 %v775
        %830 = vmatprep.subr.bf16.mxu0 0
        %831 = vmatpush1.bf16.msra.mxu0 %v776
        %832 = vmatprep.subr.bf16.mxu0 0
        %833 = vmatpush1.bf16.msra.mxu0 %v777
        %834 = vmatprep.subr.bf16.mxu0 0
        %835 = vmatpush1.bf16.msra.mxu0 %v778
        %836 = vmatprep.subr.bf16.mxu0 0
        %837 = vmatpush1.bf16.msra.mxu0 %v779
        %838 = vmatprep.subr.bf16.mxu0 0
        %839 = vmatpush1.bf16.msra.mxu0 %v780
        %840 = vmatprep.subr.bf16.mxu0 0
        %841 = vmatpush1.bf16.msra.mxu0 %v781
        %842 = vmatprep.subr.bf16.mxu0 0
        %843 = vmatpush1.bf16.msra.mxu0 %v782
        %844 = vmatprep.subr.bf16.mxu0 0
        %845 = vmatpush1.bf16.msra.mxu0 %v783
        %846 = vmatprep.subr.bf16.mxu0 0
        %847 = vmatpush1.bf16.msra.mxu0 %v784
        %848 = vmatprep.subr.bf16.mxu0 0
        %849 = vmatpush1.bf16.msra.mxu0 %v785
        %850 = vmatprep.mubr.bf16.mxu0 %v666
        %851 = vmatmul.mubr.bf16.gmra.mrb[0].mxu0 %v665
        %v852 = vpop.f32.mrb[0].mxu0
        %v853 = vadd.f32 %v672, %v852
        %v854 = vpop.f32.mrb[0].mxu0
        %v855 = vpop.f32.mrb[0].mxu0
        %v856 = vadd.f32 %v672, %v855
        %v857 = vpop.f32.mrb[0].mxu0
        %858 = vdwg.mxu0
        %859 = vmatprep.subr.bf16.mxu0 0
        %860 = vmatpush1.bf16.msra.mxu0 %v786
        %861 = vmatprep.subr.bf16.mxu0 0
        %862 = vmatpush1.bf16.msra.mxu0 %v787
        %863 = vmatprep.subr.bf16.mxu0 0
        %864 = vmatpush1.bf16.msra.mxu0 %v788
        %865 = vmatprep.subr.bf16.mxu0 0
        %866 = vmatpush1.bf16.msra.mxu0 %v789
        %867 = vmatprep.subr.bf16.mxu0 0
        %868 = vmatpush1.bf16.msra.mxu0 %v790
        %869 = vmatprep.subr.bf16.mxu0 0
        %870 = vmatpush1.bf16.msra.mxu0 %v791
        %871 = vmatprep.subr.bf16.mxu0 0
        %872 = vmatpush1.bf16.msra.mxu0 %v792
        %873 = vmatprep.subr.bf16.mxu0 0
        %874 = vmatpush1.bf16.msra.mxu0 %v793
        %875 = vmatprep.subr.bf16.mxu0 0
        %876 = vmatpush1.bf16.msra.mxu0 0
        %877 = vmatprep.subr.bf16.mxu0 0
        %878 = vmatpush1.bf16.msra.mxu0 0
        %879 = vmatprep.subr.bf16.mxu0 0
        %880 = vmatpush1.bf16.msra.mxu0 0
        %881 = vmatprep.subr.bf16.mxu0 0
        %882 = vmatpush1.bf16.msra.mxu0 0
        %883 = vmatprep.subr.bf16.mxu0 0
        %884 = vmatpush1.bf16.msra.mxu0 0
        %885 = vmatprep.subr.bf16.mxu0 0
        %886 = vmatpush1.bf16.msra.mxu0 0
        %887 = vmatprep.subr.bf16.mxu0 0
        %888 = vmatpush1.bf16.msra.mxu0 0
        %889 = vmatprep.subr.bf16.mxu0 0
        %890 = vmatpush1.bf16.msra.mxu0 0
        %891 = vmatprep.mubr.bf16.mxu0 0
        %892 = vmatmul.mubr.bf16.gmra.mrb[0].mxu0 %v667
        %v893 = vpop.f32.mrb[0].mxu0
        %v894 = vadd.f32 %v853, %v893
        %v895 = vpop.f32.mrb[0].mxu0
        %v896 = vpop.f32.mrb[0].mxu0
        %v897 = vadd.f32 %v856, %v896
        %v898 = vpop.f32.mrb[0].mxu0
        %899 = vdwg.mxu0
        %v900 = vld [vmem:[#allocation8] sm:$0x1]
        %v902 = vlaneseq
        %v903 = vshrl.u32 %v902, 7
        %v904 = vsub.s32 0, %v903
        %v905 = vrot.slane %v900, %v904
        %v907 = vmul.f32 %v894, %v905
        %v908 = vmul.f32 %v897, %v905
        %v909 = vld [vmem:[#allocation10] sm:$0x1]
        %v911 = vlaneseq
        %v912 = vshrl.u32 %v911, 7
        %v913 = vsub.s32 0, %v912
        %v914 = vrot.slane %v909, %v913
        %v916 = vadd.f32 %v907, %v914
        %v917 = vadd.f32 %v908, %v914
        %v918 = vmax.f32 %v916, 0.0
        %v919 = vmax.f32 %v917, 0.0
        %v920 = vld [vmem:[#allocation11] sm:$0xf]
        %v921 = vld [vmem:[#allocation11 + $0x4] sm:$0xf]
        %v922 = vld [vmem:[#allocation11 + $0x8] sm:$0xf]
        %v923 = vld [vmem:[#allocation11 + $0xc] sm:$0xf]
        %v924 = vld [vmem:[#allocation11 + $0x10] sm:$0xf]
        %v925 = vld [vmem:[#allocation11 + $0x14] sm:$0xf]
        %v926 = vld [vmem:[#allocation11 + $0x18] sm:$0xf]
        %v927 = vld [vmem:[#allocation11 + $0x1c] sm:$0xf]
        %v928 = vld [vmem:[#allocation11 + $0x20] sm:$0xf]
        %v929 = vld [vmem:[#allocation11 + $0x24] sm:$0xf]
        %v930 = vld [vmem:[#allocation11 + $0x28] sm:$0xf]
        %v931 = vld [vmem:[#allocation11 + $0x2c] sm:$0xf]
        %v932 = vld [vmem:[#allocation11 + $0x30] sm:$0xf]
        %v933 = vld [vmem:[#allocation11 + $0x34] sm:$0xf]
        %v934 = vld [vmem:[#allocation11 + $0x38] sm:$0xf]
        %v935 = vld [vmem:[#allocation11 + $0x3c] sm:$0xf]
        %v936 = vld [vmem:[#allocation11 + $0x40] sm:$0xf]
        %v937 = vld [vmem:[#allocation11 + $0x44] sm:$0xf]
        %v938 = vld [vmem:[#allocation11 + $0x48] sm:$0xf]
        %v939 = vld [vmem:[#allocation11 + $0x4c] sm:$0xf]
        %v940 = vld [vmem:[#allocation11 + $0x50] sm:$0xf]
        %v941 = vld [vmem:[#allocation11 + $0x54] sm:$0xf]
        %v942 = vld [vmem:[#allocation11 + $0x58] sm:$0xf]
        %v943 = vld [vmem:[#allocation11 + $0x5c] sm:$0xf]
        %v944 = vld [vmem:[#allocation11 + $0x60] sm:$0xf]
        %v945 = vld [vmem:[#allocation11 + $0x64] sm:$0xf]
        %v946 = vld [vmem:[#allocation11 + $0x68] sm:$0xf]
        %v947 = vld [vmem:[#allocation11 + $0x6c] sm:$0xf]
        %v948 = vld [vmem:[#allocation11 + $0x70] sm:$0xf]
        %v949 = vld [vmem:[#allocation11 + $0x74] sm:$0xf]
        %v950 = vld [vmem:[#allocation11 + $0x78] sm:$0xf]
        %v951 = vld [vmem:[#allocation11 + $0x7c] sm:$0xf]
        %v952 = vld [vmem:[#allocation11 + $0x80] sm:$0xf]
        %v953 = vld [vmem:[#allocation11 + $0x84] sm:$0xf]
        %v954 = vld [vmem:[#allocation11 + $0x88] sm:$0xf]
        %v955 = vld [vmem:[#allocation11 + $0x8c] sm:$0xf]
        %v956 = vld [vmem:[#allocation11 + $0x90] sm:$0xf]
        %v957 = vld [vmem:[#allocation11 + $0x94] sm:$0xf]
        %v958 = vld [vmem:[#allocation11 + $0x98] sm:$0xf]
        %v959 = vld [vmem:[#allocation11 + $0x9c] sm:$0xf]
        %v960 = vld [vmem:[#allocation11 + $0xa0] sm:$0xf]
        %v961 = vld [vmem:[#allocation11 + $0xa4] sm:$0xf]
        %v962 = vld [vmem:[#allocation11 + $0xa8] sm:$0xf]
        %v963 = vld [vmem:[#allocation11 + $0xac] sm:$0xf]
        %v964 = vld [vmem:[#allocation11 + $0xb0] sm:$0xf]
        %v965 = vld [vmem:[#allocation11 + $0xb4] sm:$0xf]
        %v966 = vld [vmem:[#allocation11 + $0xb8] sm:$0xf]
        %v967 = vld [vmem:[#allocation11 + $0xbc] sm:$0xf]
        %v968 = vld [vmem:[#allocation13] sm:$0x1]
        %v969 = vrot.slane %v918, 7
        %v970 = vrot.slane %v919, 7
        %v971 = vsel %vm653, %v969, %v970
        %v972 = vsel %vm653, %v970, %v969
        %v973 = vmul.f32 %v972, %v586
        %v974 = vmul.f32 %v971, %v587
        %v975 = vrot.slane %v918, 1
        %v976 = vrot.slane %v919, 1
        %v977 = vsel %vm660, %v975, %v976
        %v978 = vsel %vm660, %v976, %v975
        %v979 = vmul.f32 %v977, %v598
        %v980 = vmul.f32 %v978, %v599
        %v981 = vpack.c.bf16 %v974, %v973
        %v982 = vpack.c.bf16 %v919, %v918
        %v983 = vpack.c.bf16 %v980, %v979
        %v985 = vlaneseq
        %v986 = vshrl.u32 %v985, 7
        %v987 = vsub.s32 0, %v986
        %v988 = vrot.slane %v968, %v987
        %v1038 = vunpack.c.l.b16 %v920
        %v1039 = vunpack.c.l.b16 %v921
        %v1040 = vunpack.c.l.b16 %v922
        %v1041 = vunpack.c.l.b16 %v923
        %v1042 = vunpack.c.l.b16 %v924
        %v1043 = vunpack.c.l.b16 %v925
        %v1044 = vunpack.c.l.b16 %v926
        %v1045 = vunpack.c.l.b16 %v927
        %v1046 = vunpack.c.l.b16 %v928
        %v1047 = vunpack.c.l.b16 %v929
        %v1048 = vunpack.c.l.b16 %v930
        %v1049 = vunpack.c.l.b16 %v931
        %v1050 = vunpack.c.l.b16 %v932
        %v1051 = vunpack.c.l.b16 %v933
        %v1052 = vunpack.c.l.b16 %v934
        %v1053 = vunpack.c.l.b16 %v935
        %v1054 = vunpack.c.l.b16 %v936
        %v1055 = vunpack.c.l.b16 %v937
        %v1056 = vunpack.c.l.b16 %v938
        %v1057 = vunpack.c.l.b16 %v939
        %v1058 = vunpack.c.l.b16 %v940
        %v1059 = vunpack.c.l.b16 %v941
        %v1060 = vunpack.c.l.b16 %v942
        %v1061 = vunpack.c.l.b16 %v943
        %v1062 = vunpack.c.l.b16 %v944
        %v1063 = vunpack.c.l.b16 %v945
        %v1064 = vunpack.c.l.b16 %v946
        %v1065 = vunpack.c.l.b16 %v947
        %v1066 = vunpack.c.l.b16 %v948
        %v1067 = vunpack.c.l.b16 %v949
        %v1068 = vunpack.c.l.b16 %v950
        %v1069 = vunpack.c.l.b16 %v951
        %v1070 = vunpack.c.l.b16 %v952
        %v1071 = vunpack.c.l.b16 %v953
        %v1072 = vunpack.c.l.b16 %v954
        %v1073 = vunpack.c.l.b16 %v955
        %v1074 = vunpack.c.l.b16 %v956
        %v1075 = vunpack.c.l.b16 %v957
        %v1076 = vunpack.c.l.b16 %v958
        %v1077 = vunpack.c.l.b16 %v959
        %v1078 = vunpack.c.l.b16 %v960
        %v1079 = vunpack.c.l.b16 %v961
        %v1080 = vunpack.c.l.b16 %v962
        %v1081 = vunpack.c.l.b16 %v963
        %v1082 = vunpack.c.l.b16 %v964
        %v1083 = vunpack.c.l.b16 %v965
        %v1084 = vunpack.c.l.b16 %v966
        %v1085 = vunpack.c.l.b16 %v967
        %v1086 = vpack.c.b16 %v1039, %v1038
        %v1087 = vpack.c.b16 %v1041, %v1040
        %v1088 = vpack.c.b16 %v1043, %v1042
        %v1089 = vpack.c.b16 %v1045, %v1044
        %v1090 = vpack.c.b16 %v1047, %v1046
        %v1091 = vpack.c.b16 %v1049, %v1048
        %v1092 = vpack.c.b16 %v1051, %v1050
        %v1093 = vpack.c.b16 %v1053, %v1052
        %v1094 = vpack.c.b16 %v1055, %v1054
        %v1095 = vpack.c.b16 %v1057, %v1056
        %v1096 = vpack.c.b16 %v1059, %v1058
        %v1097 = vpack.c.b16 %v1061, %v1060
        %v1098 = vpack.c.b16 %v1063, %v1062
        %v1099 = vpack.c.b16 %v1065, %v1064
        %v1100 = vpack.c.b16 %v1067, %v1066
        %v1101 = vpack.c.b16 %v1069, %v1068
        %v1102 = vpack.c.b16 %v1071, %v1070
        %v1103 = vpack.c.b16 %v1073, %v1072
        %v1104 = vpack.c.b16 %v1075, %v1074
        %v1105 = vpack.c.b16 %v1077, %v1076
        %v1106 = vpack.c.b16 %v1079, %v1078
        %v1107 = vpack.c.b16 %v1081, %v1080
        %v1108 = vpack.c.b16 %v1083, %v1082
        %v1109 = vpack.c.b16 %v1085, %v1084
        %1134 = vmatprep.subr.bf16.mxu0 0
        %1135 = vmatpush1.bf16.msra.mxu0 %v1086
        %1136 = vmatprep.subr.bf16.mxu0 0
        %1137 = vmatpush1.bf16.msra.mxu0 %v1087
        %1138 = vmatprep.subr.bf16.mxu0 0
        %1139 = vmatpush1.bf16.msra.mxu0 %v1088
        %1140 = vmatprep.subr.bf16.mxu0 0
        %1141 = vmatpush1.bf16.msra.mxu0 %v1089
        %1142 = vmatprep.subr.bf16.mxu0 0
        %1143 = vmatpush1.bf16.msra.mxu0 %v1090
        %1144 = vmatprep.subr.bf16.mxu0 0
        %1145 = vmatpush1.bf16.msra.mxu0 %v1091
        %1146 = vmatprep.subr.bf16.mxu0 0
        %1147 = vmatpush1.bf16.msra.mxu0 %v1092
        %1148 = vmatprep.subr.bf16.mxu0 0
        %1149 = vmatpush1.bf16.msra.mxu0 %v1093
        %1150 = vmatprep.subr.bf16.mxu0 0
        %1151 = vmatpush1.bf16.msra.mxu0 %v1094
        %1152 = vmatprep.subr.bf16.mxu0 0
        %1153 = vmatpush1.bf16.msra.mxu0 %v1095
        %1154 = vmatprep.subr.bf16.mxu0 0
        %1155 = vmatpush1.bf16.msra.mxu0 %v1096
        %1156 = vmatprep.subr.bf16.mxu0 0
        %1157 = vmatpush1.bf16.msra.mxu0 %v1097
        %1158 = vmatprep.subr.bf16.mxu0 0
        %1159 = vmatpush1.bf16.msra.mxu0 %v1098
        %1160 = vmatprep.subr.bf16.mxu0 0
        %1161 = vmatpush1.bf16.msra.mxu0 %v1099
        %1162 = vmatprep.subr.bf16.mxu0 0
        %1163 = vmatpush1.bf16.msra.mxu0 %v1100
        %1164 = vmatprep.subr.bf16.mxu0 0
        %1165 = vmatpush1.bf16.msra.mxu0 %v1101
        %1166 = vmatprep.mubr.bf16.mxu0 %v982
        %1167 = vmatmul.mubr.bf16.gmra.mrb[0].mxu0 %v981
        %v1168 = vpop.f32.mrb[0].mxu0
        %v1169 = vadd.f32 %v988, %v1168
        %v1170 = vpop.f32.mrb[0].mxu0
        %v1171 = vpop.f32.mrb[0].mxu0
        %v1172 = vadd.f32 %v988, %v1171
        %v1173 = vpop.f32.mrb[0].mxu0
        %1174 = vdwg.mxu0
        %1175 = vmatprep.subr.bf16.mxu0 0
        %1176 = vmatpush1.bf16.msra.mxu0 %v1102
        %1177 = vmatprep.subr.bf16.mxu0 0
        %1178 = vmatpush1.bf16.msra.mxu0 %v1103
        %1179 = vmatprep.subr.bf16.mxu0 0
        %1180 = vmatpush1.bf16.msra.mxu0 %v1104
        %1181 = vmatprep.subr.bf16.mxu0 0
        %1182 = vmatpush1.bf16.msra.mxu0 %v1105
        %1183 = vmatprep.subr.bf16.mxu0 0
        %1184 = vmatpush1.bf16.msra.mxu0 %v1106
        %1185 = vmatprep.subr.bf16.mxu0 0
        %1186 = vmatpush1.bf16.msra.mxu0 %v1107
        %1187 = vmatprep.subr.bf16.mxu0 0
        %1188 = vmatpush1.bf16.msra.mxu0 %v1108
        %1189 = vmatprep.subr.bf16.mxu0 0
        %1190 = vmatpush1.bf16.msra.mxu0 %v1109
        %1191 = vmatprep.subr.bf16.mxu0 0
        %1192 = vmatpush1.bf16.msra.mxu0 0
        %1193 = vmatprep.subr.bf16.mxu0 0
        %1194 = vmatpush1.bf16.msra.mxu0 0
        %1195 = vmatprep.subr.bf16.mxu0 0
        %1196 = vmatpush1.bf16.msra.mxu0 0
        %1197 = vmatprep.subr.bf16.mxu0 0
        %1198 = vmatpush1.bf16.msra.mxu0 0
        %1199 = vmatprep.subr.bf16.mxu0 0
        %1200 = vmatpush1.bf16.msra.mxu0 0
        %1201 = vmatprep.subr.bf16.mxu0 0
        %1202 = vmatpush1.bf16.msra.mxu0 0
        %1203 = vmatprep.subr.bf16.mxu0 0
        %1204 = vmatpush1.bf16.msra.mxu0 0
        %1205 = vmatprep.subr.bf16.mxu0 0
        %1206 = vmatpush1.bf16.msra.mxu0 0
        %1207 = vmatprep.mubr.bf16.mxu0 0
        %1208 = vmatmul.mubr.bf16.gmra.mrb[0].mxu0 %v983
        %v1209 = vpop.f32.mrb[0].mxu0
        %v1210 = vadd.f32 %v1169, %v1209
        %v1211 = vpop.f32.mrb[0].mxu0
        %v1212 = vpop.f32.mrb[0].mxu0
        %v1213 = vadd.f32 %v1172, %v1212
        %v1214 = vpop.f32.mrb[0].mxu0
        %1215 = vdwg.mxu0
        %v1216 = vmax.f32 %v1210, 0.0
        %v1217 = vmax.f32 %v1213, 0.0
        %v1218 = vld [vmem:[#allocation14] sm:$0xf]
        %v1219 = vld [vmem:[#allocation14 + $0x4] sm:$0xf]
        %v1220 = vld [vmem:[#allocation14 + $0x8] sm:$0xf]
        %v1221 = vld [vmem:[#allocation14 + $0xc] sm:$0xf]
        %v1222 = vld [vmem:[#allocation14 + $0x10] sm:$0xf]
        %v1223 = vld [vmem:[#allocation14 + $0x14] sm:$0xf]
        %v1224 = vld [vmem:[#allocation14 + $0x18] sm:$0xf]
        %v1225 = vld [vmem:[#allocation14 + $0x1c] sm:$0xf]
        %v1226 = vld [vmem:[#allocation14 + $0x20] sm:$0xf]
        %v1227 = vld [vmem:[#allocation14 + $0x24] sm:$0xf]
        %v1228 = vld [vmem:[#allocation14 + $0x28] sm:$0xf]
        %v1229 = vld [vmem:[#allocation14 + $0x2c] sm:$0xf]
        %v1230 = vld [vmem:[#allocation14 + $0x30] sm:$0xf]
        %v1231 = vld [vmem:[#allocation14 + $0x34] sm:$0xf]
        %v1232 = vld [vmem:[#allocation14 + $0x38] sm:$0xf]
        %v1233 = vld [vmem:[#allocation14 + $0x3c] sm:$0xf]
        %v1234 = vld [vmem:[#allocation14 + $0x40] sm:$0xf]
        %v1235 = vld [vmem:[#allocation14 + $0x44] sm:$0xf]
        %v1236 = vld [vmem:[#allocation14 + $0x48] sm:$0xf]
        %v1237 = vld [vmem:[#allocation14 + $0x4c] sm:$0xf]
        %v1238 = vld [vmem:[#allocation14 + $0x50] sm:$0xf]
        %v1239 = vld [vmem:[#allocation14 + $0x54] sm:$0xf]
        %v1240 = vld [vmem:[#allocation14 + $0x58] sm:$0xf]
        %v1241 = vld [vmem:[#allocation14 + $0x5c] sm:$0xf]
        %v1242 = vld [vmem:[#allocation14 + $0x60] sm:$0xf]
        %v1243 = vld [vmem:[#allocation14 + $0x64] sm:$0xf]
        %v1244 = vld [vmem:[#allocation14 + $0x68] sm:$0xf]
        %v1245 = vld [vmem:[#allocation14 + $0x6c] sm:$0xf]
        %v1246 = vld [vmem:[#allocation14 + $0x70] sm:$0xf]
        %v1247 = vld [vmem:[#allocation14 + $0x74] sm:$0xf]
        %v1248 = vld [vmem:[#allocation14 + $0x78] sm:$0xf]
        %v1249 = vld [vmem:[#allocation14 + $0x7c] sm:$0xf]
        %v1250 = vld [vmem:[#allocation14 + $0x80] sm:$0xf]
        %v1251 = vld [vmem:[#allocation14 + $0x84] sm:$0xf]
        %v1252 = vld [vmem:[#allocation14 + $0x88] sm:$0xf]
        %v1253 = vld [vmem:[#allocation14 + $0x8c] sm:$0xf]
        %v1254 = vld [vmem:[#allocation14 + $0x90] sm:$0xf]
        %v1255 = vld [vmem:[#allocation14 + $0x94] sm:$0xf]
        %v1256 = vld [vmem:[#allocation14 + $0x98] sm:$0xf]
        %v1257 = vld [vmem:[#allocation14 + $0x9c] sm:$0xf]
        %v1258 = vld [vmem:[#allocation14 + $0xa0] sm:$0xf]
        %v1259 = vld [vmem:[#allocation14 + $0xa4] sm:$0xf]
        %v1260 = vld [vmem:[#allocation14 + $0xa8] sm:$0xf]
        %v1261 = vld [vmem:[#allocation14 + $0xac] sm:$0xf]
        %v1262 = vld [vmem:[#allocation14 + $0xb0] sm:$0xf]
        %v1263 = vld [vmem:[#allocation14 + $0xb4] sm:$0xf]
        %v1264 = vld [vmem:[#allocation14 + $0xb8] sm:$0xf]
        %v1265 = vld [vmem:[#allocation14 + $0xbc] sm:$0xf]
        %v1266 = vld [vmem:[#allocation16] sm:$0x1]
        %v1267 = vrot.slane %v1216, 7
        %v1268 = vrot.slane %v1217, 7
        %v1269 = vsel %vm653, %v1267, %v1268
        %v1270 = vsel %vm653, %v1268, %v1267
        %v1271 = vmul.f32 %v1270, %v586
        %v1272 = vmul.f32 %v1269, %v587
        %v1273 = vrot.slane %v1216, 1
        %v1274 = vrot.slane %v1217, 1
        %v1275 = vsel %vm660, %v1273, %v1274
        %v1276 = vsel %vm660, %v1274, %v1273
        %v1277 = vmul.f32 %v1275, %v598
        %v1278 = vmul.f32 %v1276, %v599
        %v1279 = vpack.c.bf16 %v1272, %v1271
        %v1280 = vpack.c.bf16 %v1217, %v1216
        %v1281 = vpack.c.bf16 %v1278, %v1277
        %v1283 = vlaneseq
        %v1284 = vshrl.u32 %v1283, 7
        %v1285 = vsub.s32 0, %v1284
        %v1286 = vrot.slane %v1266, %v1285
        %v1336 = vunpack.c.l.b16 %v1218
        %v1337 = vunpack.c.l.b16 %v1219
        %v1338 = vunpack.c.l.b16 %v1220
        %v1339 = vunpack.c.l.b16 %v1221
        %v1340 = vunpack.c.l.b16 %v1222
        %v1341 = vunpack.c.l.b16 %v1223
        %v1342 = vunpack.c.l.b16 %v1224
        %v1343 = vunpack.c.l.b16 %v1225
        %v1344 = vunpack.c.l.b16 %v1226
        %v1345 = vunpack.c.l.b16 %v1227
        %v1346 = vunpack.c.l.b16 %v1228
        %v1347 = vunpack.c.l.b16 %v1229
        %v1348 = vunpack.c.l.b16 %v1230
        %v1349 = vunpack.c.l.b16 %v1231
        %v1350 = vunpack.c.l.b16 %v1232
        %v1351 = vunpack.c.l.b16 %v1233
        %v1352 = vunpack.c.l.b16 %v1234
        %v1353 = vunpack.c.l.b16 %v1235
        %v1354 = vunpack.c.l.b16 %v1236
        %v1355 = vunpack.c.l.b16 %v1237
        %v1356 = vunpack.c.l.b16 %v1238
        %v1357 = vunpack.c.l.b16 %v1239
        %v1358 = vunpack.c.l.b16 %v1240
        %v1359 = vunpack.c.l.b16 %v1241
        %v1360 = vunpack.c.l.b16 %v1242
        %v1361 = vunpack.c.l.b16 %v1243
        %v1362 = vunpack.c.l.b16 %v1244
        %v1363 = vunpack.c.l.b16 %v1245
        %v1364 = vunpack.c.l.b16 %v1246
        %v1365 = vunpack.c.l.b16 %v1247
        %v1366 = vunpack.c.l.b16 %v1248
        %v1367 = vunpack.c.l.b16 %v1249
        %v1368 = vunpack.c.l.b16 %v1250
        %v1369 = vunpack.c.l.b16 %v1251
        %v1370 = vunpack.c.l.b16 %v1252
        %v1371 = vunpack.c.l.b16 %v1253
        %v1372 = vunpack.c.l.b16 %v1254
        %v1373 = vunpack.c.l.b16 %v1255
        %v1374 = vunpack.c.l.b16 %v1256
        %v1375 = vunpack.c.l.b16 %v1257
        %v1376 = vunpack.c.l.b16 %v1258
        %v1377 = vunpack.c.l.b16 %v1259
        %v1378 = vunpack.c.l.b16 %v1260
        %v1379 = vunpack.c.l.b16 %v1261
        %v1380 = vunpack.c.l.b16 %v1262
        %v1381 = vunpack.c.l.b16 %v1263
        %v1382 = vunpack.c.l.b16 %v1264
        %v1383 = vunpack.c.l.b16 %v1265
        %v1384 = vpack.c.b16 %v1337, %v1336
        %v1385 = vpack.c.b16 %v1339, %v1338
        %v1386 = vpack.c.b16 %v1341, %v1340
        %v1387 = vpack.c.b16 %v1343, %v1342
        %v1388 = vpack.c.b16 %v1345, %v1344
        %v1389 = vpack.c.b16 %v1347, %v1346
        %v1390 = vpack.c.b16 %v1349, %v1348
        %v1391 = vpack.c.b16 %v1351, %v1350
        %v1392 = vpack.c.b16 %v1353, %v1352
        %v1393 = vpack.c.b16 %v1355, %v1354
        %v1394 = vpack.c.b16 %v1357, %v1356
        %v1395 = vpack.c.b16 %v1359, %v1358
        %v1396 = vpack.c.b16 %v1361, %v1360
        %v1397 = vpack.c.b16 %v1363, %v1362
        %v1398 = vpack.c.b16 %v1365, %v1364
        %v1399 = vpack.c.b16 %v1367, %v1366
        %v1400 = vpack.c.b16 %v1369, %v1368
        %v1401 = vpack.c.b16 %v1371, %v1370
        %v1402 = vpack.c.b16 %v1373, %v1372
        %v1403 = vpack.c.b16 %v1375, %v1374
        %v1404 = vpack.c.b16 %v1377, %v1376
        %v1405 = vpack.c.b16 %v1379, %v1378
        %v1406 = vpack.c.b16 %v1381, %v1380
        %v1407 = vpack.c.b16 %v1383, %v1382
        %1432 = vmatprep.subr.bf16.mxu0 0
        %1433 = vmatpush1.bf16.msra.mxu0 %v1384
        %1434 = vmatprep.subr.bf16.mxu0 0
        %1435 = vmatpush1.bf16.msra.mxu0 %v1385
        %1436 = vmatprep.subr.bf16.mxu0 0
        %1437 = vmatpush1.bf16.msra.mxu0 %v1386
        %1438 = vmatprep.subr.bf16.mxu0 0
        %1439 = vmatpush1.bf16.msra.mxu0 %v1387
        %1440 = vmatprep.subr.bf16.mxu0 0
        %1441 = vmatpush1.bf16.msra.mxu0 %v1388
        %1442 = vmatprep.subr.bf16.mxu0 0
        %1443 = vmatpush1.bf16.msra.mxu0 %v1389
        %1444 = vmatprep.subr.bf16.mxu0 0
        %1445 = vmatpush1.bf16.msra.mxu0 %v1390
        %1446 = vmatprep.subr.bf16.mxu0 0
        %1447 = vmatpush1.bf16.msra.mxu0 %v1391
        %1448 = vmatprep.subr.bf16.mxu0 0
        %1449 = vmatpush1.bf16.msra.mxu0 %v1392
        %1450 = vmatprep.subr.bf16.mxu0 0
        %1451 = vmatpush1.bf16.msra.mxu0 %v1393
        %1452 = vmatprep.subr.bf16.mxu0 0
        %1453 = vmatpush1.bf16.msra.mxu0 %v1394
        %1454 = vmatprep.subr.bf16.mxu0 0
        %1455 = vmatpush1.bf16.msra.mxu0 %v1395
        %1456 = vmatprep.subr.bf16.mxu0 0
        %1457 = vmatpush1.bf16.msra.mxu0 %v1396
        %1458 = vmatprep.subr.bf16.mxu0 0
        %1459 = vmatpush1.bf16.msra.mxu0 %v1397
        %1460 = vmatprep.subr.bf16.mxu0 0
        %1461 = vmatpush1.bf16.msra.mxu0 %v1398
        %1462 = vmatprep.subr.bf16.mxu0 0
        %1463 = vmatpush1.bf16.msra.mxu0 %v1399
        %1464 = vmatprep.mubr.bf16.mxu0 %v1280
        %1465 = vmatmul.mubr.bf16.gmra.mrb[0].mxu0 %v1279
        %v1466 = vpop.f32.mrb[0].mxu0
        %v1467 = vadd.f32 %v1286, %v1466
        %v1468 = vpop.f32.mrb[0].mxu0
        %v1469 = vpop.f32.mrb[0].mxu0
        %v1470 = vadd.f32 %v1286, %v1469
        %v1471 = vpop.f32.mrb[0].mxu0
        %1472 = vdwg.mxu0
        %1473 = vmatprep.subr.bf16.mxu0 0
        %1474 = vmatpush1.bf16.msra.mxu0 %v1400
        %1475 = vmatprep.subr.bf16.mxu0 0
        %1476 = vmatpush1.bf16.msra.mxu0 %v1401
        %1477 = vmatprep.subr.bf16.mxu0 0
        %1478 = vmatpush1.bf16.msra.mxu0 %v1402
        %1479 = vmatprep.subr.bf16.mxu0 0
        %1480 = vmatpush1.bf16.msra.mxu0 %v1403
        %1481 = vmatprep.subr.bf16.mxu0 0
        %1482 = vmatpush1.bf16.msra.mxu0 %v1404
        %1483 = vmatprep.subr.bf16.mxu0 0
        %1484 = vmatpush1.bf16.msra.mxu0 %v1405
        %1485 = vmatprep.subr.bf16.mxu0 0
        %1486 = vmatpush1.bf16.msra.mxu0 %v1406
        %1487 = vmatprep.subr.bf16.mxu0 0
        %1488 = vmatpush1.bf16.msra.mxu0 %v1407
        %1489 = vmatprep.subr.bf16.mxu0 0
        %1490 = vmatpush1.bf16.msra.mxu0 0
        %1491 = vmatprep.subr.bf16.mxu0 0
        %1492 = vmatpush1.bf16.msra.mxu0 0
        %1493 = vmatprep.subr.bf16.mxu0 0
        %1494 = vmatpush1.bf16.msra.mxu0 0
        %1495 = vmatprep.subr.bf16.mxu0 0
        %1496 = vmatpush1.bf16.msra.mxu0 0
        %1497 = vmatprep.subr.bf16.mxu0 0
        %1498 = vmatpush1.bf16.msra.mxu0 0
        %1499 = vmatprep.subr.bf16.mxu0 0
        %1500 = vmatpush1.bf16.msra.mxu0 0
        %1501 = vmatprep.subr.bf16.mxu0 0
        %1502 = vmatpush1.bf16.msra.mxu0 0
        %1503 = vmatprep.subr.bf16.mxu0 0
        %1504 = vmatpush1.bf16.msra.mxu0 0
        %1505 = vmatprep.mubr.bf16.mxu0 0
        %1506 = vmatmul.mubr.bf16.gmra.mrb[0].mxu0 %v1281
        %v1507 = vpop.f32.mrb[0].mxu0
        %v1508 = vadd.f32 %v1467, %v1507
        %v1509 = vpop.f32.mrb[0].mxu0
        %v1510 = vpop.f32.mrb[0].mxu0
        %v1511 = vadd.f32 %v1470, %v1510
        %v1512 = vpop.f32.mrb[0].mxu0
        %1513 = vdwg.mxu0
        %v1514 = vadd.f32 %v894, %v1508
        %v1515 = vadd.f32 %v897, %v1511
        %s1516 = scalar_lea.vmem [#allocation8], 1
        %v1517 = vld [vmem:[%s1516] sm:$0x1]
        %v1519 = vlaneseq
        %v1520 = vshrl.u32 %v1519, 7
        %v1521 = vsub.s32 0, %v1520
        %v1522 = vrot.slane %v1517, %v1521
        %v1524 = vmul.f32 %v1514, %v1522
        %v1525 = vmul.f32 %v1515, %v1522
        %s1526 = scalar_lea.vmem [#allocation10], 1
        %v1527 = vld [vmem:[%s1526] sm:$0x1]
        %v1529 = vlaneseq
        %v1530 = vshrl.u32 %v1529, 7
        %v1531 = vsub.s32 0, %v1530
        %v1532 = vrot.slane %v1527, %v1531
        %v1534 = vadd.f32 %v1524, %v1532
        %v1535 = vadd.f32 %v1525, %v1532
        %v1536 = vmax.f32 %v1534, 0.0
        %v1537 = vmax.f32 %v1535, 0.0
        %s1538 = scalar_lea.vmem [#allocation11], 192
        %v1539 = vld [vmem:[%s1538] sm:$0xf]
        %v1540 = vld [vmem:[%s1538 + $0x4] sm:$0xf]
        %v1541 = vld [vmem:[%s1538 + $0x8] sm:$0xf]
        %v1542 = vld [vmem:[%s1538 + $0xc] sm:$0xf]
        %v1543 = vld [vmem:[%s1538 + $0x10] sm:$0xf]
        %v1544 = vld [vmem:[%s1538 + $0x14] sm:$0xf]
        %v1545 = vld [vmem:[%s1538 + $0x18] sm:$0xf]
        %v1546 = vld [vmem:[%s1538 + $0x1c] sm:$0xf]
        %v1547 = vld [vmem:[%s1538 + $0x20] sm:$0xf]
        %v1548 = vld [vmem:[%s1538 + $0x24] sm:$0xf]
        %v1549 = vld [vmem:[%s1538 + $0x28] sm:$0xf]
        %v1550 = vld [vmem:[%s1538 + $0x2c] sm:$0xf]
        %v1551 = vld [vmem:[%s1538 + $0x30] sm:$0xf]
        %v1552 = vld [vmem:[%s1538 + $0x34] sm:$0xf]
        %v1553 = vld [vmem:[%s1538 + $0x38] sm:$0xf]
        %v1554 = vld [vmem:[%s1538 + $0x3c] sm:$0xf]
        %v1555 = vld [vmem:[%s1538 + $0x40] sm:$0xf]
        %v1556 = vld [vmem:[%s1538 + $0x44] sm:$0xf]
        %v1557 = vld [vmem:[%s1538 + $0x48] sm:$0xf]
        %v1558 = vld [vmem:[%s1538 + $0x4c] sm:$0xf]
        %v1559 = vld [vmem:[%s1538 + $0x50] sm:$0xf]
        %v1560 = vld [vmem:[%s1538 + $0x54] sm:$0xf]
        %v1561 = vld [vmem:[%s1538 + $0x58] sm:$0xf]
        %v1562 = vld [vmem:[%s1538 + $0x5c] sm:$0xf]
        %v1563 = vld [vmem:[%s1538 + $0x60] sm:$0xf]
        %v1564 = vld [vmem:[%s1538 + $0x64] sm:$0xf]
        %v1565 = vld [vmem:[%s1538 + $0x68] sm:$0xf]
        %v1566 = vld [vmem:[%s1538 + $0x6c] sm:$0xf]
        %v1567 = vld [vmem:[%s1538 + $0x70] sm:$0xf]
        %v1568 = vld [vmem:[%s1538 + $0x74] sm:$0xf]
        %v1569 = vld [vmem:[%s1538 + $0x78] sm:$0xf]
        %v1570 = vld [vmem:[%s1538 + $0x7c] sm:$0xf]
        %v1571 = vld [vmem:[%s1538 + $0x80] sm:$0xf]
        %v1572 = vld [vmem:[%s1538 + $0x84] sm:$0xf]
        %v1573 = vld [vmem:[%s1538 + $0x88] sm:$0xf]
        %v1574 = vld [vmem:[%s1538 + $0x8c] sm:$0xf]
        %v1575 = vld [vmem:[%s1538 + $0x90] sm:$0xf]
        %v1576 = vld [vmem:[%s1538 + $0x94] sm:$0xf]
        %v1577 = vld [vmem:[%s1538 + $0x98] sm:$0xf]
        %v1578 = vld [vmem:[%s1538 + $0x9c] sm:$0xf]
        %v1579 = vld [vmem:[%s1538 + $0xa0] sm:$0xf]
        %v1580 = vld [vmem:[%s1538 + $0xa4] sm:$0xf]
        %v1581 = vld [vmem:[%s1538 + $0xa8] sm:$0xf]
        %v1582 = vld [vmem:[%s1538 + $0xac] sm:$0xf]
        %v1583 = vld [vmem:[%s1538 + $0xb0] sm:$0xf]
        %v1584 = vld [vmem:[%s1538 + $0xb4] sm:$0xf]
        %v1585 = vld [vmem:[%s1538 + $0xb8] sm:$0xf]
        %v1586 = vld [vmem:[%s1538 + $0xbc] sm:$0xf]
        %s1587 = scalar_lea.vmem [#allocation13], 1
        %v1588 = vld [vmem:[%s1587] sm:$0x1]
        %v1589 = vrot.slane %v1536, 7
        %v1590 = vrot.slane %v1537, 7
        %v1591 = vsel %vm653, %v1589, %v1590
        %v1592 = vsel %vm653, %v1590, %v1589
        %v1593 = vmul.f32 %v1592, %v586
        %v1594 = vmul.f32 %v1591, %v587
        %v1595 = vrot.slane %v1536, 1
        %v1596 = vrot.slane %v1537, 1
        %v1597 = vsel %vm660, %v1595, %v1596
        %v1598 = vsel %vm660, %v1596, %v1595
        %v1599 = vmul.f32 %v1597, %v598
        %v1600 = vmul.f32 %v1598, %v599
        %v1601 = vpack.c.bf16 %v1594, %v1593
        %v1602 = vpack.c.bf16 %v1537, %v1536
        %v1603 = vpack.c.bf16 %v1600, %v1599
        %v1605 = vlaneseq
        %v1606 = vshrl.u32 %v1605, 7
        %v1607 = vsub.s32 0, %v1606
        %v1608 = vrot.slane %v1588, %v1607
        %v1658 = vunpack.c.l.b16 %v1539
        %v1659 = vunpack.c.l.b16 %v1540
        %v1660 = vunpack.c.l.b16 %v1541
        %v1661 = vunpack.c.l.b16 %v1542
        %v1662 = vunpack.c.l.b16 %v1543
        %v1663 = vunpack.c.l.b16 %v1544
        %v1664 = vunpack.c.l.b16 %v1545
        %v1665 = vunpack.c.l.b16 %v1546
        %v1666 = vunpack.c.l.b16 %v1547
        %v1667 = vunpack.c.l.b16 %v1548
        %v1668 = vunpack.c.l.b16 %v1549
        %v1669 = vunpack.c.l.b16 %v1550
        %v1670 = vunpack.c.l.b16 %v1551
        %v1671 = vunpack.c.l.b16 %v1552
        %v1672 = vunpack.c.l.b16 %v1553
        %v1673 = vunpack.c.l.b16 %v1554
        %v1674 = vunpack.c.l.b16 %v1555
        %v1675 = vunpack.c.l.b16 %v1556
        %v1676 = vunpack.c.l.b16 %v1557
        %v1677 = vunpack.c.l.b16 %v1558
        %v1678 = vunpack.c.l.b16 %v1559
        %v1679 = vunpack.c.l.b16 %v1560
        %v1680 = vunpack.c.l.b16 %v1561
        %v1681 = vunpack.c.l.b16 %v1562
        %v1682 = vunpack.c.l.b16 %v1563
        %v1683 = vunpack.c.l.b16 %v1564
        %v1684 = vunpack.c.l.b16 %v1565
        %v1685 = vunpack.c.l.b16 %v1566
        %v1686 = vunpack.c.l.b16 %v1567
        %v1687 = vunpack.c.l.b16 %v1568
        %v1688 = vunpack.c.l.b16 %v1569
        %v1689 = vunpack.c.l.b16 %v1570
        %v1690 = vunpack.c.l.b16 %v1571
        %v1691 = vunpack.c.l.b16 %v1572
        %v1692 = vunpack.c.l.b16 %v1573
        %v1693 = vunpack.c.l.b16 %v1574
        %v1694 = vunpack.c.l.b16 %v1575
        %v1695 = vunpack.c.l.b16 %v1576
        %v1696 = vunpack.c.l.b16 %v1577
        %v1697 = vunpack.c.l.b16 %v1578
        %v1698 = vunpack.c.l.b16 %v1579
        %v1699 = vunpack.c.l.b16 %v1580
        %v1700 = vunpack.c.l.b16 %v1581
        %v1701 = vunpack.c.l.b16 %v1582
        %v1702 = vunpack.c.l.b16 %v1583
        %v1703 = vunpack.c.l.b16 %v1584
        %v1704 = vunpack.c.l.b16 %v1585
        %v1705 = vunpack.c.l.b16 %v1586
        %v1706 = vpack.c.b16 %v1659, %v1658
        %v1707 = vpack.c.b16 %v1661, %v1660
        %v1708 = vpack.c.b16 %v1663, %v1662
        %v1709 = vpack.c.b16 %v1665, %v1664
        %v1710 = vpack.c.b16 %v1667, %v1666
        %v1711 = vpack.c.b16 %v1669, %v1668
        %v1712 = vpack.c.b16 %v1671, %v1670
        %v1713 = vpack.c.b16 %v1673, %v1672
        %v1714 = vpack.c.b16 %v1675, %v1674
        %v1715 = vpack.c.b16 %v1677, %v1676
        %v1716 = vpack.c.b16 %v1679, %v1678
        %v1717 = vpack.c.b16 %v1681, %v1680
        %v1718 = vpack.c.b16 %v1683, %v1682
        %v1719 = vpack.c.b16 %v1685, %v1684
        %v1720 = vpack.c.b16 %v1687, %v1686
        %v1721 = vpack.c.b16 %v1689, %v1688
        %v1722 = vpack.c.b16 %v1691, %v1690
        %v1723 = vpack.c.b16 %v1693, %v1692
        %v1724 = vpack.c.b16 %v1695, %v1694
        %v1725 = vpack.c.b16 %v1697, %v1696
        %v1726 = vpack.c.b16 %v1699, %v1698
        %v1727 = vpack.c.b16 %v1701, %v1700
        %v1728 = vpack.c.b16 %v1703, %v1702
        %v1729 = vpack.c.b16 %v1705, %v1704
        %1754 = vmatprep.subr.bf16.mxu0 0
        %1755 = vmatpush1.bf16.msra.mxu0 %v1706
        %1756 = vmatprep.subr.bf16.mxu0 0
        %1757 = vmatpush1.bf16.msra.mxu0 %v1707
        %1758 = vmatprep.subr.bf16.mxu0 0
        %1759 = vmatpush1.bf16.msra.mxu0 %v1708
        %1760 = vmatprep.subr.bf16.mxu0 0
        %1761 = vmatpush1.bf16.msra.mxu0 %v1709
        %1762 = vmatprep.subr.bf16.mxu0 0
        %1763 = vmatpush1.bf16.msra.mxu0 %v1710
        %1764 = vmatprep.subr.bf16.mxu0 0
        %1765 = vmatpush1.bf16.msra.mxu0 %v1711
        %1766 = vmatprep.subr.bf16.mxu0 0
        %1767 = vmatpush1.bf16.msra.mxu0 %v1712
        %1768 = vmatprep.subr.bf16.mxu0 0
        %1769 = vmatpush1.bf16.msra.mxu0 %v1713
        %1770 = vmatprep.subr.bf16.mxu0 0
        %1771 = vmatpush1.bf16.msra.mxu0 %v1714
        %1772 = vmatprep.subr.bf16.mxu0 0
        %1773 = vmatpush1.bf16.msra.mxu0 %v1715
        %1774 = vmatprep.subr.bf16.mxu0 0
        %1775 = vmatpush1.bf16.msra.mxu0 %v1716
        %1776 = vmatprep.subr.bf16.mxu0 0
        %1777 = vmatpush1.bf16.msra.mxu0 %v1717
        %1778 = vmatprep.subr.bf16.mxu0 0
        %1779 = vmatpush1.bf16.msra.mxu0 %v1718
        %1780 = vmatprep.subr.bf16.mxu0 0
        %1781 = vmatpush1.bf16.msra.mxu0 %v1719
        %1782 = vmatprep.subr.bf16.mxu0 0
        %1783 = vmatpush1.bf16.msra.mxu0 %v1720
        %1784 = vmatprep.subr.bf16.mxu0 0
        %1785 = vmatpush1.bf16.msra.mxu0 %v1721
        %1786 = vmatprep.mubr.bf16.mxu0 %v1602
        %1787 = vmatmul.mubr.bf16.gmra.mrb[0].mxu0 %v1601
        %v1788 = vpop.f32.mrb[0].mxu0
        %v1789 = vadd.f32 %v1608, %v1788
        %v1790 = vpop.f32.mrb[0].mxu0
        %v1791 = vpop.f32.mrb[0].mxu0
        %v1792 = vadd.f32 %v1608, %v1791
        %v1793 = vpop.f32.mrb[0].mxu0
        %1794 = vdwg.mxu0
        %1795 = vmatprep.subr.bf16.mxu0 0
        %1796 = vmatpush1.bf16.msra.mxu0 %v1722
        %1797 = vmatprep.subr.bf16.mxu0 0
        %1798 = vmatpush1.bf16.msra.mxu0 %v1723
        %1799 = vmatprep.subr.bf16.mxu0 0
        %1800 = vmatpush1.bf16.msra.mxu0 %v1724
        %1801 = vmatprep.subr.bf16.mxu0 0
        %1802 = vmatpush1.bf16.msra.mxu0 %v1725
        %1803 = vmatprep.subr.bf16.mxu0 0
        %1804 = vmatpush1.bf16.msra.mxu0 %v1726
        %1805 = vmatprep.subr.bf16.mxu0 0
        %1806 = vmatpush1.bf16.msra.mxu0 %v1727
        %1807 = vmatprep.subr.bf16.mxu0 0
        %1808 = vmatpush1.bf16.msra.mxu0 %v1728
        %1809 = vmatprep.subr.bf16.mxu0 0
        %1810 = vmatpush1.bf16.msra.mxu0 %v1729
        %1811 = vmatprep.subr.bf16.mxu0 0
        %1812 = vmatpush1.bf16.msra.mxu0 0
        %1813 = vmatprep.subr.bf16.mxu0 0
        %1814 = vmatpush1.bf16.msra.mxu0 0
        %1815 = vmatprep.subr.bf16.mxu0 0
        %1816 = vmatpush1.bf16.msra.mxu0 0
        %1817 = vmatprep.subr.bf16.mxu0 0
        %1818 = vmatpush1.bf16.msra.mxu0 0
        %1819 = vmatprep.subr.bf16.mxu0 0
        %1820 = vmatpush1.bf16.msra.mxu0 0
        %1821 = vmatprep.subr.bf16.mxu0 0
        %1822 = vmatpush1.bf16.msra.mxu0 0
        %1823 = vmatprep.subr.bf16.mxu0 0
        %1824 = vmatpush1.bf16.msra.mxu0 0
        %1825 = vmatprep.subr.bf16.mxu0 0
        %1826 = vmatpush1.bf16.msra.mxu0 0
        %1827 = vmatprep.mubr.bf16.mxu0 0
        %1828 = vmatmul.mubr.bf16.gmra.mrb[0].mxu0 %v1603
        %v1829 = vpop.f32.mrb[0].mxu0
        %v1830 = vadd.f32 %v1789, %v1829
        %v1831 = vpop.f32.mrb[0].mxu0
        %v1832 = vpop.f32.mrb[0].mxu0
        %v1833 = vadd.f32 %v1792, %v1832
        %v1834 = vpop.f32.mrb[0].mxu0
        %1835 = vdwg.mxu0
        %v1836 = vmax.f32 %v1830, 0.0
        %v1837 = vmax.f32 %v1833, 0.0
        %s1838 = scalar_lea.vmem [#allocation14], 192
        %v1839 = vld [vmem:[%s1838] sm:$0xf]
        %v1840 = vld [vmem:[%s1838 + $0x4] sm:$0xf]
        %v1841 = vld [vmem:[%s1838 + $0x8] sm:$0xf]
        %v1842 = vld [vmem:[%s1838 + $0xc] sm:$0xf]
        %v1843 = vld [vmem:[%s1838 + $0x10] sm:$0xf]
        %v1844 = vld [vmem:[%s1838 + $0x14] sm:$0xf]
        %v1845 = vld [vmem:[%s1838 + $0x18] sm:$0xf]
        %v1846 = vld [vmem:[%s1838 + $0x1c] sm:$0xf]
        %v1847 = vld [vmem:[%s1838 + $0x20] sm:$0xf]
        %v1848 = vld [vmem:[%s1838 + $0x24] sm:$0xf]
        %v1849 = vld [vmem:[%s1838 + $0x28] sm:$0xf]
        %v1850 = vld [vmem:[%s1838 + $0x2c] sm:$0xf]
        %v1851 = vld [vmem:[%s1838 + $0x30] sm:$0xf]
        %v1852 = vld [vmem:[%s1838 + $0x34] sm:$0xf]
        %v1853 = vld [vmem:[%s1838 + $0x38] sm:$0xf]
        %v1854 = vld [vmem:[%s1838 + $0x3c] sm:$0xf]
        %v1855 = vld [vmem:[%s1838 + $0x40] sm:$0xf]
        %v1856 = vld [vmem:[%s1838 + $0x44] sm:$0xf]
        %v1857 = vld [vmem:[%s1838 + $0x48] sm:$0xf]
        %v1858 = vld [vmem:[%s1838 + $0x4c] sm:$0xf]
        %v1859 = vld [vmem:[%s1838 + $0x50] sm:$0xf]
        %v1860 = vld [vmem:[%s1838 + $0x54] sm:$0xf]
        %v1861 = vld [vmem:[%s1838 + $0x58] sm:$0xf]
        %v1862 = vld [vmem:[%s1838 + $0x5c] sm:$0xf]
        %v1863 = vld [vmem:[%s1838 + $0x60] sm:$0xf]
        %v1864 = vld [vmem:[%s1838 + $0x64] sm:$0xf]
        %v1865 = vld [vmem:[%s1838 + $0x68] sm:$0xf]
        %v1866 = vld [vmem:[%s1838 + $0x6c] sm:$0xf]
        %v1867 = vld [vmem:[%s1838 + $0x70] sm:$0xf]
        %v1868 = vld [vmem:[%s1838 + $0x74] sm:$0xf]
        %v1869 = vld [vmem:[%s1838 + $0x78] sm:$0xf]
        %v1870 = vld [vmem:[%s1838 + $0x7c] sm:$0xf]
        %v1871 = vld [vmem:[%s1838 + $0x80] sm:$0xf]
        %v1872 = vld [vmem:[%s1838 + $0x84] sm:$0xf]
        %v1873 = vld [vmem:[%s1838 + $0x88] sm:$0xf]
        %v1874 = vld [vmem:[%s1838 + $0x8c] sm:$0xf]
        %v1875 = vld [vmem:[%s1838 + $0x90] sm:$0xf]
        %v1876 = vld [vmem:[%s1838 + $0x94] sm:$0xf]
        %v1877 = vld [vmem:[%s1838 + $0x98] sm:$0xf]
        %v1878 = vld [vmem:[%s1838 + $0x9c] sm:$0xf]
        %v1879 = vld [vmem:[%s1838 + $0xa0] sm:$0xf]
        %v1880 = vld [vmem:[%s1838 + $0xa4] sm:$0xf]
        %v1881 = vld [vmem:[%s1838 + $0xa8] sm:$0xf]
        %v1882 = vld [vmem:[%s1838 + $0xac] sm:$0xf]
        %v1883 = vld [vmem:[%s1838 + $0xb0] sm:$0xf]
        %v1884 = vld [vmem:[%s1838 + $0xb4] sm:$0xf]
        %v1885 = vld [vmem:[%s1838 + $0xb8] sm:$0xf]
        %v1886 = vld [vmem:[%s1838 + $0xbc] sm:$0xf]
        %s1887 = scalar_lea.vmem [#allocation16], 1
        %v1888 = vld [vmem:[%s1887] sm:$0x1]
        %v1889 = vrot.slane %v1836, 7
        %v1890 = vrot.slane %v1837, 7
        %v1891 = vsel %vm653, %v1889, %v1890
        %v1892 = vsel %vm653, %v1890, %v1889
        %v1893 = vmul.f32 %v1892, %v586
        %v1894 = vmul.f32 %v1891, %v587
        %v1895 = vrot.slane %v1836, 1
        %v1896 = vrot.slane %v1837, 1
        %v1897 = vsel %vm660, %v1895, %v1896
        %v1898 = vsel %vm660, %v1896, %v1895
        %v1899 = vmul.f32 %v1897, %v598
        %v1900 = vmul.f32 %v1898, %v599
        %v1901 = vpack.c.bf16 %v1894, %v1893
        %v1902 = vpack.c.bf16 %v1837, %v1836
        %v1903 = vpack.c.bf16 %v1900, %v1899
        %v1905 = vlaneseq
        %v1906 = vshrl.u32 %v1905, 7
        %v1907 = vsub.s32 0, %v1906
        %v1908 = vrot.slane %v1888, %v1907
        %v1958 = vunpack.c.l.b16 %v1839
        %v1959 = vunpack.c.l.b16 %v1840
        %v1960 = vunpack.c.l.b16 %v1841
        %v1961 = vunpack.c.l.b16 %v1842
        %v1962 = vunpack.c.l.b16 %v1843
        %v1963 = vunpack.c.l.b16 %v1844
        %v1964 = vunpack.c.l.b16 %v1845
        %v1965 = vunpack.c.l.b16 %v1846
        %v1966 = vunpack.c.l.b16 %v1847
        %v1967 = vunpack.c.l.b16 %v1848
        %v1968 = vunpack.c.l.b16 %v1849
        %v1969 = vunpack.c.l.b16 %v1850
        %v1970 = vunpack.c.l.b16 %v1851
        %v1971 = vunpack.c.l.b16 %v1852
        %v1972 = vunpack.c.l.b16 %v1853
        %v1973 = vunpack.c.l.b16 %v1854
        %v1974 = vunpack.c.l.b16 %v1855
        %v1975 = vunpack.c.l.b16 %v1856
        %v1976 = vunpack.c.l.b16 %v1857
        %v1977 = vunpack.c.l.b16 %v1858
        %v1978 = vunpack.c.l.b16 %v1859
        %v1979 = vunpack.c.l.b16 %v1860
        %v1980 = vunpack.c.l.b16 %v1861
        %v1981 = vunpack.c.l.b16 %v1862
        %v1982 = vunpack.c.l.b16 %v1863
        %v1983 = vunpack.c.l.b16 %v1864
        %v1984 = vunpack.c.l.b16 %v1865
        %v1985 = vunpack.c.l.b16 %v1866
        %v1986 = vunpack.c.l.b16 %v1867
        %v1987 = vunpack.c.l.b16 %v1868
        %v1988 = vunpack.c.l.b16 %v1869
        %v1989 = vunpack.c.l.b16 %v1870
        %v1990 = vunpack.c.l.b16 %v1871
        %v1991 = vunpack.c.l.b16 %v1872
        %v1992 = vunpack.c.l.b16 %v1873
        %v1993 = vunpack.c.l.b16 %v1874
        %v1994 = vunpack.c.l.b16 %v1875
        %v1995 = vunpack.c.l.b16 %v1876
        %v1996 = vunpack.c.l.b16 %v1877
        %v1997 = vunpack.c.l.b16 %v1878
        %v1998 = vunpack.c.l.b16 %v1879
        %v1999 = vunpack.c.l.b16 %v1880
        %v2000 = vunpack.c.l.b16 %v1881
        %v2001 = vunpack.c.l.b16 %v1882
        %v2002 = vunpack.c.l.b16 %v1883
        %v2003 = vunpack.c.l.b16 %v1884
        %v2004 = vunpack.c.l.b16 %v1885
        %v2005 = vunpack.c.l.b16 %v1886
        %v2006 = vpack.c.b16 %v1959, %v1958
        %v2007 = vpack.c.b16 %v1961, %v1960
        %v2008 = vpack.c.b16 %v1963, %v1962
        %v2009 = vpack.c.b16 %v1965, %v1964
        %v2010 = vpack.c.b16 %v1967, %v1966
        %v2011 = vpack.c.b16 %v1969, %v1968
        %v2012 = vpack.c.b16 %v1971, %v1970
        %v2013 = vpack.c.b16 %v1973, %v1972
        %v2014 = vpack.c.b16 %v1975, %v1974
        %v2015 = vpack.c.b16 %v1977, %v1976
        %v2016 = vpack.c.b16 %v1979, %v1978
        %v2017 = vpack.c.b16 %v1981, %v1980
        %v2018 = vpack.c.b16 %v1983, %v1982
        %v2019 = vpack.c.b16 %v1985, %v1984
        %v2020 = vpack.c.b16 %v1987, %v1986
        %v2021 = vpack.c.b16 %v1989, %v1988
        %v2022 = vpack.c.b16 %v1991, %v1990
        %v2023 = vpack.c.b16 %v1993, %v1992
        %v2024 = vpack.c.b16 %v1995, %v1994
        %v2025 = vpack.c.b16 %v1997, %v1996
        %v2026 = vpack.c.b16 %v1999, %v1998
        %v2027 = vpack.c.b16 %v2001, %v2000
        %v2028 = vpack.c.b16 %v2003, %v2002
        %v2029 = vpack.c.b16 %v2005, %v2004
        %2054 = vmatprep.subr.bf16.mxu0 0
        %2055 = vmatpush1.bf16.msra.mxu0 %v2006
        %2056 = vmatprep.subr.bf16.mxu0 0
        %2057 = vmatpush1.bf16.msra.mxu0 %v2007
        %2058 = vmatprep.subr.bf16.mxu0 0
        %2059 = vmatpush1.bf16.msra.mxu0 %v2008
        %2060 = vmatprep.subr.bf16.mxu0 0
        %2061 = vmatpush1.bf16.msra.mxu0 %v2009
        %2062 = vmatprep.subr.bf16.mxu0 0
        %2063 = vmatpush1.bf16.msra.mxu0 %v2010
        %2064 = vmatprep.subr.bf16.mxu0 0
        %2065 = vmatpush1.bf16.msra.mxu0 %v2011
        %2066 = vmatprep.subr.bf16.mxu0 0
        %2067 = vmatpush1.bf16.msra.mxu0 %v2012
        %2068 = vmatprep.subr.bf16.mxu0 0
        %2069 = vmatpush1.bf16.msra.mxu0 %v2013
        %2070 = vmatprep.subr.bf16.mxu0 0
        %2071 = vmatpush1.bf16.msra.mxu0 %v2014
        %2072 = vmatprep.subr.bf16.mxu0 0
        %2073 = vmatpush1.bf16.msra.mxu0 %v2015
        %2074 = vmatprep.subr.bf16.mxu0 0
        %2075 = vmatpush1.bf16.msra.mxu0 %v2016
        %2076 = vmatprep.subr.bf16.mxu0 0
        %2077 = vmatpush1.bf16.msra.mxu0 %v2017
        %2078 = vmatprep.subr.bf16.mxu0 0
        %2079 = vmatpush1.bf16.msra.mxu0 %v2018
        %2080 = vmatprep.subr.bf16.mxu0 0
        %2081 = vmatpush1.bf16.msra.mxu0 %v2019
        %2082 = vmatprep.subr.bf16.mxu0 0
        %2083 = vmatpush1.bf16.msra.mxu0 %v2020
        %2084 = vmatprep.subr.bf16.mxu0 0
        %2085 = vmatpush1.bf16.msra.mxu0 %v2021
        %2086 = vmatprep.mubr.bf16.mxu0 %v1902
        %2087 = vmatmul.mubr.bf16.gmra.mrb[0].mxu0 %v1901
        %v2088 = vpop.f32.mrb[0].mxu0
        %v2089 = vadd.f32 %v1908, %v2088
        %v2090 = vpop.f32.mrb[0].mxu0
        %v2091 = vpop.f32.mrb[0].mxu0
        %v2092 = vadd.f32 %v1908, %v2091
        %v2093 = vpop.f32.mrb[0].mxu0
        %2094 = vdwg.mxu0
        %2095 = vmatprep.subr.bf16.mxu0 0
        %2096 = vmatpush1.bf16.msra.mxu0 %v2022
        %2097 = vmatprep.subr.bf16.mxu0 0
        %2098 = vmatpush1.bf16.msra.mxu0 %v2023
        %2099 = vmatprep.subr.bf16.mxu0 0
        %2100 = vmatpush1.bf16.msra.mxu0 %v2024
        %2101 = vmatprep.subr.bf16.mxu0 0
        %2102 = vmatpush1.bf16.msra.mxu0 %v2025
        %2103 = vmatprep.subr.bf16.mxu0 0
        %2104 = vmatpush1.bf16.msra.mxu0 %v2026
        %2105 = vmatprep.subr.bf16.mxu0 0
        %2106 = vmatpush1.bf16.msra.mxu0 %v2027
        %2107 = vmatprep.subr.bf16.mxu0 0
        %2108 = vmatpush1.bf16.msra.mxu0 %v2028
        %2109 = vmatprep.subr.bf16.mxu0 0
        %2110 = vmatpush1.bf16.msra.mxu0 %v2029
        %2111 = vmatprep.subr.bf16.mxu0 0
        %2112 = vmatpush1.bf16.msra.mxu0 0
        %2113 = vmatprep.subr.bf16.mxu0 0
        %2114 = vmatpush1.bf16.msra.mxu0 0
        %2115 = vmatprep.subr.bf16.mxu0 0
        %2116 = vmatpush1.bf16.msra.mxu0 0
        %2117 = vmatprep.subr.bf16.mxu0 0
        %2118 = vmatpush1.bf16.msra.mxu0 0
        %2119 = vmatprep.subr.bf16.mxu0 0
        %2120 = vmatpush1.bf16.msra.mxu0 0
        %2121 = vmatprep.subr.bf16.mxu0 0
        %2122 = vmatpush1.bf16.msra.mxu0 0
        %2123 = vmatprep.subr.bf16.mxu0 0
        %2124 = vmatpush1.bf16.msra.mxu0 0
        %2125 = vmatprep.subr.bf16.mxu0 0
        %2126 = vmatpush1.bf16.msra.mxu0 0
        %2127 = vmatprep.mubr.bf16.mxu0 0
        %2128 = vmatmul.mubr.bf16.gmra.mrb[0].mxu0 %v1903
        %v2129 = vpop.f32.mrb[0].mxu0
        %v2130 = vadd.f32 %v2089, %v2129
        %v2131 = vpop.f32.mrb[0].mxu0
        %v2132 = vpop.f32.mrb[0].mxu0
        %v2133 = vadd.f32 %v2092, %v2132
        %v2134 = vpop.f32.mrb[0].mxu0
        %2135 = vdwg.mxu0
        %v2136 = vadd.f32 %v1514, %v2130
        %v2137 = vadd.f32 %v1515, %v2133
        %v2138 = vld [vmem:[#allocation17] sm:$0xf]
        %v2139 = vld [vmem:[#allocation17 + $0x4] sm:$0xf]
        %v2140 = vld [vmem:[#allocation17 + $0x8] sm:$0xf]
        %v2141 = vld [vmem:[#allocation17 + $0xc] sm:$0xf]
        %v2142 = vld [vmem:[#allocation17 + $0x10] sm:$0xf]
        %v2143 = vld [vmem:[#allocation17 + $0x14] sm:$0xf]
        %v2144 = vld [vmem:[#allocation17 + $0x18] sm:$0xf]
        %v2145 = vld [vmem:[#allocation17 + $0x1c] sm:$0xf]
        %v2146 = vld [vmem:[#allocation17 + $0x20] sm:$0xf]
        %v2147 = vld [vmem:[#allocation17 + $0x24] sm:$0xf]
        %v2148 = vld [vmem:[#allocation17 + $0x28] sm:$0xf]
        %v2149 = vld [vmem:[#allocation17 + $0x2c] sm:$0xf]
        %v2150 = vld [vmem:[#allocation17 + $0x30] sm:$0xf]
        %v2151 = vld [vmem:[#allocation17 + $0x34] sm:$0xf]
        %v2152 = vld [vmem:[#allocation17 + $0x38] sm:$0xf]
        %v2153 = vld [vmem:[#allocation17 + $0x3c] sm:$0xf]
        %v2154 = vld [vmem:[#allocation17 + $0x40] sm:$0xf]
        %v2155 = vld [vmem:[#allocation17 + $0x44] sm:$0xf]
        %v2156 = vld [vmem:[#allocation17 + $0x48] sm:$0xf]
        %v2157 = vld [vmem:[#allocation17 + $0x4c] sm:$0xf]
        %v2158 = vld [vmem:[#allocation17 + $0x50] sm:$0xf]
        %v2159 = vld [vmem:[#allocation17 + $0x54] sm:$0xf]
        %v2160 = vld [vmem:[#allocation17 + $0x58] sm:$0xf]
        %v2161 = vld [vmem:[#allocation17 + $0x5c] sm:$0xf]
        %v2162 = vld [vmem:[#allocation17 + $0x60] sm:$0xf]
        %v2163 = vld [vmem:[#allocation17 + $0x64] sm:$0xf]
        %v2164 = vld [vmem:[#allocation17 + $0x68] sm:$0xf]
        %v2165 = vld [vmem:[#allocation17 + $0x6c] sm:$0xf]
        %v2166 = vld [vmem:[#allocation17 + $0x70] sm:$0xf]
        %v2167 = vld [vmem:[#allocation17 + $0x74] sm:$0xf]
        %v2168 = vld [vmem:[#allocation17 + $0x78] sm:$0xf]
        %v2169 = vld [vmem:[#allocation17 + $0x7c] sm:$0xf]
        %v2170 = vld [vmem:[#allocation17 + $0x80] sm:$0xf]
        %v2171 = vld [vmem:[#allocation17 + $0x84] sm:$0xf]
        %v2172 = vld [vmem:[#allocation17 + $0x88] sm:$0xf]
        %v2173 = vld [vmem:[#allocation17 + $0x8c] sm:$0xf]
        %v2174 = vld [vmem:[#allocation17 + $0x90] sm:$0xf]
        %v2175 = vld [vmem:[#allocation17 + $0x94] sm:$0xf]
        %v2176 = vld [vmem:[#allocation17 + $0x98] sm:$0xf]
        %v2177 = vld [vmem:[#allocation17 + $0x9c] sm:$0xf]
        %v2178 = vld [vmem:[#allocation17 + $0xa0] sm:$0xf]
        %v2179 = vld [vmem:[#allocation17 + $0xa4] sm:$0xf]
        %v2180 = vld [vmem:[#allocation17 + $0xa8] sm:$0xf]
        %v2181 = vld [vmem:[#allocation17 + $0xac] sm:$0xf]
        %v2182 = vld [vmem:[#allocation17 + $0xb0] sm:$0xf]
        %v2183 = vld [vmem:[#allocation17 + $0xb4] sm:$0xf]
        %v2184 = vld [vmem:[#allocation17 + $0xb8] sm:$0xf]
        %v2185 = vld [vmem:[#allocation17 + $0xbc] sm:$0xf]
        %v2186 = vld [vmem:[#allocation19] sm:$0x1]
        %v2187 = vrot.slane %v2136, 7
        %v2188 = vrot.slane %v2137, 7
        %v2189 = vsel %vm653, %v2187, %v2188
        %v2190 = vsel %vm653, %v2188, %v2187
        %v2191 = vmul.f32 %v2190, %v586
        %v2192 = vmul.f32 %v2189, %v587
        %v2193 = vrot.slane %v2136, 1
        %v2194 = vrot.slane %v2137, 1
        %v2195 = vsel %vm660, %v2193, %v2194
        %v2196 = vsel %vm660, %v2194, %v2193
        %v2197 = vmul.f32 %v2195, %v598
        %v2198 = vmul.f32 %v2196, %v599
        %v2199 = vpack.c.bf16 %v2192, %v2191
        %v2200 = vpack.c.bf16 %v2137, %v2136
        %v2201 = vpack.c.bf16 %v2198, %v2197
        %v2203 = vlaneseq
        %v2204 = vshrl.u32 %v2203, 7
        %v2205 = vsub.s32 0, %v2204
        %v2206 = vrot.slane %v2186, %v2205
        %v2256 = vunpack.c.l.b16 %v2138
        %v2257 = vunpack.c.l.b16 %v2139
        %v2258 = vunpack.c.l.b16 %v2140
        %v2259 = vunpack.c.l.b16 %v2141
        %v2260 = vunpack.c.l.b16 %v2142
        %v2261 = vunpack.c.l.b16 %v2143
        %v2262 = vunpack.c.l.b16 %v2144
        %v2263 = vunpack.c.l.b16 %v2145
        %v2264 = vunpack.c.l.b16 %v2146
        %v2265 = vunpack.c.l.b16 %v2147
        %v2266 = vunpack.c.l.b16 %v2148
        %v2267 = vunpack.c.l.b16 %v2149
        %v2268 = vunpack.c.l.b16 %v2150
        %v2269 = vunpack.c.l.b16 %v2151
        %v2270 = vunpack.c.l.b16 %v2152
        %v2271 = vunpack.c.l.b16 %v2153
        %v2272 = vunpack.c.l.b16 %v2154
        %v2273 = vunpack.c.l.b16 %v2155
        %v2274 = vunpack.c.l.b16 %v2156
        %v2275 = vunpack.c.l.b16 %v2157
        %v2276 = vunpack.c.l.b16 %v2158
        %v2277 = vunpack.c.l.b16 %v2159
        %v2278 = vunpack.c.l.b16 %v2160
        %v2279 = vunpack.c.l.b16 %v2161
        %v2280 = vunpack.c.l.b16 %v2162
        %v2281 = vunpack.c.l.b16 %v2163
        %v2282 = vunpack.c.l.b16 %v2164
        %v2283 = vunpack.c.l.b16 %v2165
        %v2284 = vunpack.c.l.b16 %v2166
        %v2285 = vunpack.c.l.b16 %v2167
        %v2286 = vunpack.c.l.b16 %v2168
        %v2287 = vunpack.c.l.b16 %v2169
        %v2288 = vunpack.c.l.b16 %v2170
        %v2289 = vunpack.c.l.b16 %v2171
        %v2290 = vunpack.c.l.b16 %v2172
        %v2291 = vunpack.c.l.b16 %v2173
        %v2292 = vunpack.c.l.b16 %v2174
        %v2293 = vunpack.c.l.b16 %v2175
        %v2294 = vunpack.c.l.b16 %v2176
        %v2295 = vunpack.c.l.b16 %v2177
        %v2296 = vunpack.c.l.b16 %v2178
        %v2297 = vunpack.c.l.b16 %v2179
        %v2298 = vunpack.c.l.b16 %v2180
        %v2299 = vunpack.c.l.b16 %v2181
        %v2300 = vunpack.c.l.b16 %v2182
        %v2301 = vunpack.c.l.b16 %v2183
        %v2302 = vunpack.c.l.b16 %v2184
        %v2303 = vunpack.c.l.b16 %v2185
        %v2304 = vpack.c.b16 %v2257, %v2256
        %v2305 = vpack.c.b16 %v2259, %v2258
        %v2306 = vpack.c.b16 %v2261, %v2260
        %v2307 = vpack.c.b16 %v2263, %v2262
        %v2308 = vpack.c.b16 %v2265, %v2264
        %v2309 = vpack.c.b16 %v2267, %v2266
        %v2310 = vpack.c.b16 %v2269, %v2268
        %v2311 = vpack.c.b16 %v2271, %v2270
        %v2312 = vpack.c.b16 %v2273, %v2272
        %v2313 = vpack.c.b16 %v2275, %v2274
        %v2314 = vpack.c.b16 %v2277, %v2276
        %v2315 = vpack.c.b16 %v2279, %v2278
        %v2316 = vpack.c.b16 %v2281, %v2280
        %v2317 = vpack.c.b16 %v2283, %v2282
        %v2318 = vpack.c.b16 %v2285, %v2284
        %v2319 = vpack.c.b16 %v2287, %v2286
        %v2320 = vpack.c.b16 %v2289, %v2288
        %v2321 = vpack.c.b16 %v2291, %v2290
        %v2322 = vpack.c.b16 %v2293, %v2292
        %v2323 = vpack.c.b16 %v2295, %v2294
        %v2324 = vpack.c.b16 %v2297, %v2296
        %v2325 = vpack.c.b16 %v2299, %v2298
        %v2326 = vpack.c.b16 %v2301, %v2300
        %v2327 = vpack.c.b16 %v2303, %v2302
        %2352 = vmatprep.subr.bf16.mxu0 0
        %2353 = vmatpush1.bf16.msra.mxu0 %v2304
        %2354 = vmatprep.subr.bf16.mxu0 0
        %2355 = vmatpush1.bf16.msra.mxu0 %v2305
        %2356 = vmatprep.subr.bf16.mxu0 0
        %2357 = vmatpush1.bf16.msra.mxu0 %v2306
        %2358 = vmatprep.subr.bf16.mxu0 0
        %2359 = vmatpush1.bf16.msra.mxu0 %v2307
        %2360 = vmatprep.subr.bf16.mxu0 0
        %2361 = vmatpush1.bf16.msra.mxu0 %v2308
        %2362 = vmatprep.subr.bf16.mxu0 0
        %2363 = vmatpush1.bf16.msra.mxu0 %v2309
        %2364 = vmatprep.subr.bf16.mxu0 0
        %2365 = vmatpush1.bf16.msra.mxu0 %v2310
        %2366 = vmatprep.subr.bf16.mxu0 0
        %2367 = vmatpush1.bf16.msra.mxu0 %v2311
        %2368 = vmatprep.subr.bf16.mxu0 0
        %2369 = vmatpush1.bf16.msra.mxu0 %v2312
        %2370 = vmatprep.subr.bf16.mxu0 0
        %2371 = vmatpush1.bf16.msra.mxu0 %v2313
        %2372 = vmatprep.subr.bf16.mxu0 0
        %2373 = vmatpush1.bf16.msra.mxu0 %v2314
        %2374 = vmatprep.subr.bf16.mxu0 0
        %2375 = vmatpush1.bf16.msra.mxu0 %v2315
        %2376 = vmatprep.subr.bf16.mxu0 0
        %2377 = vmatpush1.bf16.msra.mxu0 %v2316
        %2378 = vmatprep.subr.bf16.mxu0 0
        %2379 = vmatpush1.bf16.msra.mxu0 %v2317
        %2380 = vmatprep.subr.bf16.mxu0 0
        %2381 = vmatpush1.bf16.msra.mxu0 %v2318
        %2382 = vmatprep.subr.bf16.mxu0 0
        %2383 = vmatpush1.bf16.msra.mxu0 %v2319
        %2384 = vmatprep.mubr.bf16.mxu0 %v2200
        %2385 = vmatmul.mubr.bf16.gmra.mrb[0].mxu0 %v2199
        %v2386 = vpop.f32.mrb[0].mxu0
        %v2387 = vadd.f32 %v2206, %v2386
        %v2388 = vpop.f32.mrb[0].mxu0
        %v2389 = vpop.f32.mrb[0].mxu0
        %v2390 = vadd.f32 %v2206, %v2389
        %v2391 = vpop.f32.mrb[0].mxu0
        %2392 = vdwg.mxu0
        %2393 = vmatprep.subr.bf16.mxu0 0
        %2394 = vmatpush1.bf16.msra.mxu0 %v2320
        %2395 = vmatprep.subr.bf16.mxu0 0
        %2396 = vmatpush1.bf16.msra.mxu0 %v2321
        %2397 = vmatprep.subr.bf16.mxu0 0
        %2398 = vmatpush1.bf16.msra.mxu0 %v2322
        %2399 = vmatprep.subr.bf16.mxu0 0
        %2400 = vmatpush1.bf16.msra.mxu0 %v2323
        %2401 = vmatprep.subr.bf16.mxu0 0
        %2402 = vmatpush1.bf16.msra.mxu0 %v2324
        %2403 = vmatprep.subr.bf16.mxu0 0
        %2404 = vmatpush1.bf16.msra.mxu0 %v2325
        %2405 = vmatprep.subr.bf16.mxu0 0
        %2406 = vmatpush1.bf16.msra.mxu0 %v2326
        %2407 = vmatprep.subr.bf16.mxu0 0
        %2408 = vmatpush1.bf16.msra.mxu0 %v2327
        %2409 = vmatprep.subr.bf16.mxu0 0
        %2410 = vmatpush1.bf16.msra.mxu0 0
        %2411 = vmatprep.subr.bf16.mxu0 0
        %2412 = vmatpush1.bf16.msra.mxu0 0
        %2413 = vmatprep.subr.bf16.mxu0 0
        %2414 = vmatpush1.bf16.msra.mxu0 0
        %2415 = vmatprep.subr.bf16.mxu0 0
        %2416 = vmatpush1.bf16.msra.mxu0 0
        %2417 = vmatprep.subr.bf16.mxu0 0
        %2418 = vmatpush1.bf16.msra.mxu0 0
        %2419 = vmatprep.subr.bf16.mxu0 0
        %2420 = vmatpush1.bf16.msra.mxu0 0
        %2421 = vmatprep.subr.bf16.mxu0 0
        %2422 = vmatpush1.bf16.msra.mxu0 0
        %2423 = vmatprep.subr.bf16.mxu0 0
        %2424 = vmatpush1.bf16.msra.mxu0 0
        %2425 = vmatprep.mubr.bf16.mxu0 0
        %2426 = vmatmul.mubr.bf16.gmra.mrb[0].mxu0 %v2201
        %v2427 = vpop.f32.mrb[0].mxu0
        %v2428 = vadd.f32 %v2387, %v2427
        %v2429 = vpop.f32.mrb[0].mxu0
        %v2430 = vpop.f32.mrb[0].mxu0
        %v2431 = vadd.f32 %v2390, %v2430
        %v2432 = vpop.f32.mrb[0].mxu0
        %2433 = vdwg.mxu0
        %2434 = vst [vmem:[%s545] sm:$0xff] %v2428
        %2435 = vst [vmem:[%s545 + $0x8] sm:$0xff] %v2431
        %s2436 = sand.u32 %s277, 1
        %s2437 = scalar_lea.sflag [#allocation4], %s2436
        %s2438 = sand.u32 %s277, 1
        %s2439 = smul.addr %s2438, 16
        %s2440 = scalar_lea.vmem [#allocation20], %s2439
        // Predicated region
        $region109: #{tpu_custom_call.1} parent=63 // pred_check
          %p2441 = pneg %p287
        $region110: #{tpu_custom_call.1} parent=63 // pred_check_branch
          %2443 = sbr.rel (%p2441) target = $region112
        $region111: #{tpu_custom_call.1} parent=63 // pred_region
          %s2444 = smul.u32 2, %s33
          %s2446 = ssub.s32 256, 256
          %2447 = vsyncadd %s2437, %s2446
          %s2448 = smul.addr %s2444, 128
          %s2449 = scalar_lea.hbm %s11, %s2448
          %s2450 = sshll.u32 %s2440, 4
          %s2451 = int_to_ptr.vmem [resolvable:$true] %s2450
          %2456 = dma.vmem_to_hbm [thread:$0]  %s2451, 256, %s2449, %s2437, 128, 128, 8
        $region112: #{tpu_custom_call.1} parent=63 // pred_fallthru
          _
      $region64: #{tpu_custom_call.1} parent=5 // pred_fallthru
        _
      %p2457 = scmp.le.s32.totalorder 2, %s28
      // Predicated region
      $region113: #{tpu_custom_call.1} parent=5 // pred_check
        %p2458 = pneg %p2457
      $region114: #{tpu_custom_call.1} parent=5 // pred_check_branch
        %2460 = sbr.rel (%p2458) target = $region116
      $region115: #{tpu_custom_call.1} parent=5 // pred_region
        %s2461 = ssub.s32 %s28, 2
        // Predicated region
        $region117: #{tpu_custom_call.1} parent=115 // pred_check
          %p2462 = pneg %p293
        $region118: #{tpu_custom_call.1} parent=115 // pred_check_branch
          %2464 = sbr.rel (%p2462) target = $region120
        $region119: #{tpu_custom_call.1} parent=115 // pred_region
          %s2465 = sand.u32 %s278, 1
          %s2466 = scalar_lea.sflag [#allocation4], %s2465
          %s2467 = sand.u32 %s278, 1
          %s2468 = smul.addr %s2467, 16
          %s2469 = scalar_lea.vmem [#allocation20], %s2468
          %2470 = dma.done %s2466, 256
        $region120: #{tpu_custom_call.1} parent=115 // pred_fallthru
          _
      $region116: #{tpu_custom_call.1} parent=5 // pred_fallthru
        _
    $region6: #{tpu_custom_call.1} parent=1 // loop_footer
      %s32 = sadd.s32 1, %s28
    $region7: #{tpu_custom_call.1} parent=1 // loop_footer_branch
      %27 = sbr.rel target = $region3
    $region8: #{tpu_custom_call.1} parent=1 // loop_exit
      _
    %2471 = vsyncpa [#allocation3], 1
    %s2472 = scalar_lea.sflag [#allocation3], 1
    %2473 = vsyncpa %s2472, 1
    %2474 = vsyncpa [#allocation6], 1
    %2475 = vsyncpa [#allocation9], 1
    %2476 = vsyncpa [#allocation12], 1
    %2477 = vsyncpa [#allocation15], 1
    %2478 = vsyncpa [#allocation18], 1
    %2479 = vsyncpa [#allocation4], 1
    %s2480 = scalar_lea.sflag [#allocation4], 1
    %2481 = vsyncpa %s2480, 1

</llo_original>
